<compile_context>
chip_gen: v7x
topology: tpu7x:2x2x1
jax: 0.10.0
libtpu: 0.0.40
codegen_flags: <defaults>
</compile_context>

<pallas_src>
import functools

import jax
import jax.numpy as jnp
from jax.experimental import pallas as pl
from jax.experimental.pallas import tpu as pltpu

BN_EPS = 1e-5


def _round_up(x, m):
    return (x + m - 1) // m * m


def _pick_vmem_limit():
    """Generation-aware scoped-VMEM request (<= 3/4 of physical capacity)."""
    try:
        cap = int(pltpu.get_tpu_info().vmem_capacity_bytes)
        return min(64 * 1024 * 1024, (cap * 3) // 4)
    except Exception:
        return 48 * 1024 * 1024  # safe on v5e / v6e / v7x


VMEM_LIMIT = _pick_vmem_limit()


def _mxu_is_256_wide():
    """v6e/v7x MXUs are 256 wide; v2-v5 are 128 wide."""
    try:
        kind = jax.devices()[0].device_kind.lower()
        if any(t in kind for t in ("v2", "v3", "v4", "v5")):
            return False
    except Exception:
        pass
    return True


_MXU_256 = _mxu_is_256_wide()


# ----------------------------------------------------------------------------
# Pallas kernels
# ----------------------------------------------------------------------------
def _gemm_epilogue_kernel(*refs, relu, has_sc):
    """(a @ w) tile on the MXU (bf16 in, f32 acc) + fused BN scale/shift
    (+ optional residual add) (+ optional ReLU)."""
    if has_sc:
        a_ref, w_ref, s_ref, b_ref, sc_ref, o_ref = refs
    else:
        a_ref, w_ref, s_ref, b_ref, o_ref = refs
        sc_ref = None
    acc = jnp.dot(a_ref[...], w_ref[...], preferred_element_type=jnp.float32)
    acc = acc * s_ref[...] + b_ref[...]
    if sc_ref is not None:
        acc = acc + sc_ref[...].astype(jnp.float32)
    if relu:
        acc = jnp.maximum(acc, 0.0)
    o_ref[...] = acc.astype(o_ref.dtype)


def _conv3x3_row_kernel(*refs, TOH, OW, relu, has_sc):
    """Stride-1 3x3 conv: the window array xw already holds the 3 column taps
    concatenated along channels (K = 3*Cin), so the conv is 3 large MXU dots
    (one per kernel row), accumulated in a VMEM f32 scratch, then the fused
    BN / residual / ReLU epilogue.  Only aligned H-plane slices are taken."""
    if has_sc:
        x_ref, w_ref, s_ref, b_ref, sc_ref, o_ref, acc_ref = refs
    else:
        x_ref, w_ref, s_ref, b_ref, o_ref, acc_ref = refs
        sc_ref = None
    C3 = x_ref.shape[-1]
    TMO = TOH * OW
    h0 = pl.program_id(1) * TOH                      # output-row tile offset
    for i in range(3):                               # 3 kernel rows, unrolled
        win = x_ref[pl.ds(h0 + i, TOH)].reshape(TMO, C3)
        part = jnp.dot(win, w_ref[i], preferred_element_type=jnp.float32)
        if i == 0:
            acc_ref[...] = part
        else:
            acc_ref[...] += part
    acc = acc_ref[...] * s_ref[...] + b_ref[...]
    if sc_ref is not None:
        acc = acc + sc_ref[...].astype(jnp.float32)
    if relu:
        acc = jnp.maximum(acc, 0.0)
    o_ref[...] = acc.astype(o_ref.dtype)


def _gap_fc_kernel(x_ref, w_ref, b_ref, o_ref, *, inv_hw):
    """Fused global-average-pool + Linear classifier (output padded to 128
    lanes for a dense store; sliced back outside)."""
    feat = jnp.sum(x_ref[...].astype(jnp.float32), axis=1) * inv_hw   # (N, C)
    logits = jnp.dot(feat.astype(jnp.bfloat16), w_ref[...],
                     preferred_element_type=jnp.float32) + b_ref[...]
    o_ref[...] = logits.astype(o_ref.dtype)


# ----------------------------------------------------------------------------
# pallas_call wrappers
# ----------------------------------------------------------------------------
def _pick_tn(cout):
    if _MXU_256 and cout % 256 == 0:
        return 256
    if cout % 128 == 0:
        return 128
    return cout


def matmul_epilogue(a, w, scale, shift, shortcut=None, relu=False, tm=256):
    """out = relu?((a @ w) * scale + shift (+ shortcut)).  a:(M,K) w:(K,Cout).
    bf16 operands, f32 accumulate, bf16 output."""
    # NOTE(v5e): if the f32 epilogue + store binds before the MXU, drop tm=128.
    M, K = a.shape
    _, Cout = w.shape
    Mp = _round_up(M, 8)
    if Mp >= tm:
        Mp = _round_up(Mp, tm)
        TM = tm
    else:
        TM = Mp
    if Mp != M:
        a = jnp.pad(a, ((0, Mp - M), (0, 0)))
        if shortcut is not None:
            shortcut = jnp.pad(shortcut, ((0, Mp - M), (0, 0)))
    TN = _pick_tn(Cout)
    # keep >= 2 grid steps so both v7x TensorCores get work
    if (Mp // TM) * (Cout // TN) < 2 and TN >= 256:
        TN //= 2
    grid = (Mp // TM, Cout // TN)

    in_specs = [
        pl.BlockSpec((TM, K), lambda i, j: (i, 0)),    # activation tile
        pl.BlockSpec((K, TN), lambda i, j: (0, j)),    # weight column block
        pl.BlockSpec((1, TN), lambda i, j: (0, j)),    # folded BN scale
        pl.BlockSpec((1, TN), lambda i, j: (0, j)),    # folded BN shift
    ]
    args = [a, w, scale, shift]
    if shortcut is not None:
        in_specs.append(pl.BlockSpec((TM, TN), lambda i, j: (i, j)))
        args.append(shortcut)

    out = pl.pallas_call(
        functools.partial(_gemm_epilogue_kernel, relu=relu,
                          has_sc=shortcut is not None),
        out_shape=jax.ShapeDtypeStruct((Mp, Cout), jnp.bfloat16),
        grid=grid,
        in_specs=in_specs,
        out_specs=pl.BlockSpec((TM, TN), lambda i, j: (i, j)),
        compiler_params=pltpu.CompilerParams(
            dimension_semantics=("parallel", "parallel"),
            vmem_limit_bytes=VMEM_LIMIT),
    )(*args)
    return out[:M]


def _pick_toh(OH, OW, C3, Cout):
    """Largest power-of-2 row tile that keeps the dot LHS / accumulator small
    enough to avoid heavy vreg spilling (fewer grid steps = less overhead)."""
    toh = OH
    while toh % 2 == 0 and (toh * OW > 512
                            or toh * OW * C3 * 2 > 256 * 1024
                            or toh * OW * Cout * 4 > 512 * 1024):
        toh //= 2
    return toh


def conv3x3_s1(xw, wk, scale, shift, shortcut, relu, OH, OW):
    """Stride-1 3x3 conv via row-merged taps.
    xw: (N, OH+2, OW, 3*Cin) bf16 column-expanded window, wk: (3, 3*Cin, Cout)."""
    N, Hp, _, C3 = xw.shape
    _, _, Cout = wk.shape
    TOH = _pick_toh(OH, OW, C3, Cout)
    TMO = TOH * OW
    M = OH * OW

    in_specs = [
        pl.BlockSpec((None, Hp, OW, C3), lambda n, t: (n, 0, 0, 0)),  # resident
        pl.BlockSpec((3, C3, Cout), lambda n, t: (0, 0, 0)),          # weights
        pl.BlockSpec((1, Cout), lambda n, t: (0, 0)),                 # BN scale
        pl.BlockSpec((1, Cout), lambda n, t: (0, 0)),                 # BN shift
    ]
    args = [xw, wk, scale, shift]
    if shortcut is not None:
        in_specs.append(pl.BlockSpec((None, TMO, Cout), lambda n, t: (n, t, 0)))
        args.append(shortcut)

    return pl.pallas_call(
        functools.partial(_conv3x3_row_kernel, TOH=TOH, OW=OW, relu=relu,
                          has_sc=shortcut is not None),
        out_shape=jax.ShapeDtypeStruct((N, M, Cout), jnp.bfloat16),
        grid=(N, OH // TOH),
        in_specs=in_specs,
        out_specs=pl.BlockSpec((None, TMO, Cout), lambda n, t: (n, t, 0)),
        scratch_shapes=[pltpu.VMEM((TMO, Cout), jnp.float32)],
        compiler_params=pltpu.CompilerParams(
            dimension_semantics=("parallel", "parallel"),
            vmem_limit_bytes=VMEM_LIMIT),
    )(*args)


def gap_fc(x, fc_w, fc_b):
    """Fused global-average-pool + nn.Linear(512, num_class)."""
    N, OH, OW, C = x.shape
    num_class = fc_w.shape[0]
    NP = max(128, _round_up(num_class, 128))        # lane-dense padded output
    w = jnp.zeros((C, NP), jnp.bfloat16).at[:, :num_class].set(
        fc_w.T.astype(jnp.bfloat16))
    b = jnp.zeros((1, NP), jnp.float32).at[:, :num_class].set(fc_b)
    x3 = x.reshape(N, OH * OW, C)
    vmem = pl.BlockSpec(memory_space=pltpu.MemorySpace.VMEM)
    out = pl.pallas_call(
        functools.partial(_gap_fc_kernel, inv_hw=1.0 / float(OH * OW)),
        out_shape=jax.ShapeDtypeStruct((N, NP), jnp.float32),
        in_specs=[vmem, vmem, vmem],
        out_specs=vmem,
        compiler_params=pltpu.CompilerParams(vmem_limit_bytes=VMEM_LIMIT),
    )(x3, w, b)
    return out[:, :num_class]


# ----------------------------------------------------------------------------
# Conv + folded BN (+ fused residual / ReLU) dispatch (static predicate)
# ----------------------------------------------------------------------------
def im2col(x, kh, kw, stride, pad):
    """x: NHWC -> (N*OH*OW, kh*kw*C) patches, feature order (kh, kw, c).
    Only used for stride-2 / 1x1 convs (expansion <= 2.25x, fused by XLA)."""
    N, H, W, C = x.shape
    if pad:
        x = jnp.pad(x, ((0, 0), (pad, pad), (pad, pad), (0, 0)))
    Hp, Wp = H + 2 * pad, W + 2 * pad
    OH = (Hp - kh) // stride + 1
    OW = (Wp - kw) // stride + 1
    cols = []
    for i in range(kh):
        for j in range(kw):
            cols.append(x[:, i:i + stride * OH:stride, j:j + stride * OW:stride, :])
    patches = jnp.stack(cols, axis=3)  # (N, OH, OW, kh*kw, C)
    return patches.reshape(N * OH * OW, kh * kw * C), OH, OW


def conv_bn(x, p, stride, relu, shortcut=None):
    """Conv (no bias) + folded eval-mode BN (+ optional fused residual add)
    (+ optional ReLU) in one Pallas call.  x: NHWC bf16."""
    w = p["w"]                                    # PyTorch (Cout, Cin, KH, KW)
    Cout, Cin, KH, KW = w.shape
    pad = (KH - 1) // 2
    N, H, W, _ = x.shape
    OH = (H + 2 * pad - KH) // stride + 1
    OW = (W + 2 * pad - KW) // stride + 1
    scale = (p["gamma"] / jnp.sqrt(p["var"] + BN_EPS)).astype(jnp.float32)
    shift = (p["beta"] - p["mean"] * scale).astype(jnp.float32)
    scale2 = scale.reshape(1, Cout)
    shift2 = shift.reshape(1, Cout)
    wt = jnp.transpose(w, (2, 3, 1, 0))           # (KH, KW, Cin, Cout)
    # residual is carried in bf16 (small precision change vs pure-f32 residual)
    sc = (None if shortcut is None
          else shortcut.reshape(N, OH * OW, Cout).astype(jnp.bfloat16))

    if KH == 3 and stride == 1:
        # static predicate: every stride-1 3x3 conv takes the fused tap path
        cin_p = _round_up(Cin, 8)                 # stem: pad Cin 3 -> 8
        xb = x.astype(jnp.bfloat16)
        if cin_p != Cin:
            xb = jnp.pad(xb, ((0, 0), (0, 0), (0, 0), (0, cin_p - Cin)))
            wt = jnp.pad(wt, ((0, 0), (0, 0), (0, cin_p - Cin), (0, 0)))
        xp = jnp.pad(xb, ((0, 0), (pad, pad), (pad, pad), (0, 0)))
        # 3x column-expanded window: channel order (j, ci) matches the
        # (KH, KW*Cin, Cout) weight reshape; XLA fuses the pad/concat glue.
        xw = jnp.concatenate([xp[:, :, j:j + OW, :] for j in range(3)], axis=-1)
        wk = wt.reshape(3, 3 * cin_p, Cout).astype(jnp.bfloat16)
        out = conv3x3_s1(xw, wk, scale2, shift2, sc, relu, OH, OW)
        return out.reshape(N, OH, OW, Cout)

    # stride-2 3x3 and 1x1 downsample convs: bf16 im2col GEMM
    patches, _, _ = im2col(x.astype(jnp.bfloat16), KH, KW, stride, pad)
    wm = wt.reshape(KH * KW * Cin, Cout).astype(jnp.bfloat16)
    sc2 = None if sc is None else sc.reshape(N * OH * OW, Cout)
    out = matmul_epilogue(patches, wm, scale2, shift2, sc2, relu)
    return out.reshape(N, OH, OW, Cout)


def conv_bn_reference(x, p, stride, relu):
    """Plain-JAX reference with identical bf16 operand quantization, f32 math."""
    w = p["w"]
    Cout, Cin, KH, KW = w.shape
    pad = (KH - 1) // 2
    patches, OH, OW = im2col(x.astype(jnp.bfloat16), KH, KW, stride, pad)
    wm = jnp.transpose(w, (2, 3, 1, 0)).reshape(KH * KW * Cin, Cout
                                                ).astype(jnp.bfloat16)
    scale = p["gamma"] / jnp.sqrt(p["var"] + BN_EPS)
    shift = p["beta"] - p["mean"] * scale
    y = patches.astype(jnp.float32) @ wm.astype(jnp.float32) * scale + shift
    if relu:
        y = jnp.maximum(y, 0.0)
    return y.reshape(x.shape[0], OH, OW, Cout)


# ----------------------------------------------------------------------------
# Deterministic parameter construction (synthetic weights)
# ----------------------------------------------------------------------------
def _conv_bn_params(key, cin, cout, k):
    kw, kg, kb, km, kv = jax.random.split(key, 5)
    return {
        "w": 0.05 * jax.random.normal(kw, (cout, cin, k, k), jnp.float32),
        "gamma": 1.0 + 0.1 * jax.random.normal(kg, (cout,), jnp.float32),
        "beta": 0.1 * jax.random.normal(kb, (cout,), jnp.float32),
        "mean": 0.1 * jax.random.normal(km, (cout,), jnp.float32),
        "var": 1.0 + 0.1 * jax.random.uniform(kv, (cout,), jnp.float32),
    }


def init_params(key, num_class=10):
    keys = iter(jax.random.split(key, 64))
    params = {"conv1": _conv_bn_params(next(keys), 3, 64, 3)}
    cfg = [(64, 64, 1), (64, 128, 2), (128, 256, 2), (256, 512, 2)]
    layers = []
    for cin, cout, stride in cfg:
        blocks = []
        for b in range(2):
            s = stride if b == 0 else 1
            bcin = cin if b == 0 else cout
            blk = {
                "conv1": _conv_bn_params(next(keys), bcin, cout, 3),
                "conv2": _conv_bn_params(next(keys), cout, cout, 3),
            }
            if s != 1 or bcin != cout:
                blk["downsample"] = _conv_bn_params(next(keys), bcin, cout, 1)
            blocks.append(blk)
        layers.append(blocks)
    params["layers"] = layers
    kcw, kcb = jax.random.split(next(keys))
    params["fc_w"] = 0.05 * jax.random.normal(kcw, (num_class, 512), jnp.float32)
    params["fc_b"] = 0.05 * jax.random.normal(kcb, (num_class,), jnp.float32)
    return params


# ----------------------------------------------------------------------------
# sspll forward:  feat = encoder(x); f = classifier(feat)
# ----------------------------------------------------------------------------
def basic_block(x, blk, stride):
    out = conv_bn(x, blk["conv1"], stride, relu=True)
    sc = (conv_bn(x, blk["downsample"], stride, relu=False)
          if "downsample" in blk else x)
    # conv2 + BN + residual add + ReLU fused into a single Pallas call
    return conv_bn(out, blk["conv2"], 1, relu=True, shortcut=sc)


def _sspll_forward(params, x_nchw):
    x = jnp.transpose(x_nchw, (0, 2, 3, 1)).astype(jnp.bfloat16)  # NCHW -> NHWC
    x = conv_bn(x, params["conv1"], 1, relu=True)                 # stem
    for layer, s in zip(params["layers"], (1, 2, 2, 2)):
        x = basic_block(x, layer[0], s)
        x = basic_block(x, layer[1], 1)
    # fused GAP + classifier (nn.Linear(512, num_class)), f32 logits
    return gap_fc(x, params["fc_w"], params["fc_b"])


sspll_forward = jax.jit(_sspll_forward)


if __name__ == "__main__":
    key = jax.random.PRNGKey(0)
    kp, kx, kt = jax.random.split(key, 3)
    params = init_params(kp, num_class=10)

    # spot-check the fused stride-1 tap-conv kernel against a plain-JAX
    # reference using the same bf16 operand quantization (f32 accumulation)
    xt = jax.random.normal(kt, (2, 16, 16, 64), jnp.float32).astype(jnp.bfloat16)
    blk = params["layers"][0][0]["conv1"]
    got = conv_bn(xt, blk, 1, relu=True).astype(jnp.float32)
    ref = conv_bn_reference(xt, blk, 1, relu=True)
    assert jnp.allclose(got, ref, atol=5e-2, rtol=5e-2), "stride-1 conv mismatch"

    # spot-check the stride-2 im2col GEMM path (layer2 block0 conv1)
    blk2 = params["layers"][1][0]["conv1"]
    got2 = conv_bn(xt, blk2, 2, relu=True).astype(jnp.float32)
    ref2 = conv_bn_reference(xt, blk2, 2, relu=True)
    assert jnp.allclose(got2, ref2, atol=5e-2, rtol=5e-2), "stride-2 conv mismatch"

    # small CIFAR-like input, PyTorch NCHW convention: (batch=2, C=3, 32, 32)
    x = jax.random.normal(kx, (2, 3, 32, 32), jnp.float32)
    out = sspll_forward(params, x)
    jax.block_until_ready(out)
    assert out.shape == (2, 10) and out.dtype == jnp.float32
    print("KERNEL_OK")
</pallas_src>

<mosaic_0001>
module attributes {stable_mosaic.version = 11 : i64} {
  func.func @_conv3x3_row_kernel(%arg0: i32, %arg1: i32, %arg2: memref<1x18x16x192xbf16, #tpu.memory_space<vmem>>, %arg3: memref<3x192x64xbf16, #tpu.memory_space<vmem>>, %arg4: memref<1x64xf32, #tpu.memory_space<vmem>>, %arg5: memref<1x64xf32, #tpu.memory_space<vmem>>, %arg6: memref<1x256x64xbf16, #tpu.memory_space<vmem>>, %arg7: memref<256x64xf32, #tpu.memory_space<vmem>>) attributes {dimension_semantics = [#tpu.dimension_semantics<parallel>, #tpu.dimension_semantics<parallel>], iteration_bounds = array<i64: 2, 1>, scalar_prefetch = 0 : i64, scratch_operands = 1 : i64, tpu.core_type = #tpu.core_type<tc>, window_params = [{transform_indices = @transform_0, window_bounds = array<i64: 1, 18, 16, 192>}, {pipeline_mode = #tpu.pipeline_mode<synchronous>, transform_indices = @transform_1, window_bounds = array<i64: 3, 192, 64>}, {pipeline_mode = #tpu.pipeline_mode<synchronous>, transform_indices = @transform_2, window_bounds = array<i64: 1, 64>}, {pipeline_mode = #tpu.pipeline_mode<synchronous>, transform_indices = @transform_3, window_bounds = array<i64: 1, 64>}, {transform_indices = @transform_4, window_bounds = array<i64: 1, 256, 64>}]} {
    %c16_i32 = arith.constant 16 : i32
    %0 = arith.muli %arg1, %c16_i32 : i32
    %c0_i32 = arith.constant 0 : i32
    %1 = arith.addi %0, %c0_i32 : i32
    %c0 = arith.constant 0 : index
    %2 = arith.index_cast %1 : i32 to index
    %c0_0 = arith.constant 0 : index
    %c0_1 = arith.constant 0 : index
    %3 = vector.load %arg2[%c0, %2, %c0_0, %c0_1] : memref<1x18x16x192xbf16, #tpu.memory_space<vmem>>, vector<1x16x16x192xbf16>
    %4 = vector.shape_cast %3 : vector<1x16x16x192xbf16> to vector<16x16x192xbf16>
    %5 = vector.shape_cast %4 : vector<16x16x192xbf16> to vector<256x192xbf16>
    %c0_2 = arith.constant 0 : index
    %c0_3 = arith.constant 0 : index
    %c0_4 = arith.constant 0 : index
    %6 = vector.load %arg3[%c0_2, %c0_3, %c0_4] : memref<3x192x64xbf16, #tpu.memory_space<vmem>>, vector<1x192x64xbf16>
    %7 = vector.shape_cast %6 : vector<1x192x64xbf16> to vector<192x64xbf16>
    %cst = arith.constant dense<0.000000e+00> : vector<256x64xf32>
    %8 = tpu.matmul %5, %7, %cst {dimension_numbers = #tpu.dot_dimension_numbers<[1], [0], [0], [1], [0, 0, 1, 1], [], []>} : vector<256x192xbf16>, vector<192x64xbf16>, vector<256x64xf32> -> vector<256x64xf32>
    %c0_5 = arith.constant 0 : index
    %c0_6 = arith.constant 0 : index
    %9 = vector.load %arg7[%c0_5, %c0_6] : memref<256x64xf32, #tpu.memory_space<vmem>>, vector<256x64xf32>
    tpu.vector_store %arg7[%c0_5, %c0_6], %8 {strides = array<i32>} : memref<256x64xf32, #tpu.memory_space<vmem>>, vector<256x64xf32>,
    %c1_i32 = arith.constant 1 : i32
    %10 = arith.addi %0, %c1_i32 : i32
    %c0_7 = arith.constant 0 : index
    %11 = arith.index_cast %10 : i32 to index
    %c0_8 = arith.constant 0 : index
    %c0_9 = arith.constant 0 : index
    %12 = vector.load %arg2[%c0_7, %11, %c0_8, %c0_9] : memref<1x18x16x192xbf16, #tpu.memory_space<vmem>>, vector<1x16x16x192xbf16>
    %13 = vector.shape_cast %12 : vector<1x16x16x192xbf16> to vector<16x16x192xbf16>
    %14 = vector.shape_cast %13 : vector<16x16x192xbf16> to vector<256x192xbf16>
    %c1 = arith.constant 1 : index
    %c0_10 = arith.constant 0 : index
    %c0_11 = arith.constant 0 : index
    %15 = vector.load %arg3[%c1, %c0_10, %c0_11] : memref<3x192x64xbf16, #tpu.memory_space<vmem>>, vector<1x192x64xbf16>
    %16 = vector.shape_cast %15 : vector<1x192x64xbf16> to vector<192x64xbf16>
    %cst_12 = arith.constant dense<0.000000e+00> : vector<256x64xf32>
    %17 = tpu.matmul %14, %16, %cst_12 {dimension_numbers = #tpu.dot_dimension_numbers<[1], [0], [0], [1], [0, 0, 1, 1], [], []>} : vector<256x192xbf16>, vector<192x64xbf16>, vector<256x64xf32> -> vector<256x64xf32>
    %c0_13 = arith.constant 0 : index
    %c0_14 = arith.constant 0 : index
    %18 = vector.load %arg7[%c0_13, %c0_14] : memref<256x64xf32, #tpu.memory_space<vmem>>, vector<256x64xf32>
    %19 = arith.addf %18, %17 : vector<256x64xf32>
    %c0_15 = arith.constant 0 : index
    %c0_16 = arith.constant 0 : index
    %20 = vector.load %arg7[%c0_15, %c0_16] : memref<256x64xf32, #tpu.memory_space<vmem>>, vector<256x64xf32>
    tpu.vector_store %arg7[%c0_15, %c0_16], %19 {strides = array<i32>} : memref<256x64xf32, #tpu.memory_space<vmem>>, vector<256x64xf32>,
    %c2_i32 = arith.constant 2 : i32
    %21 = arith.addi %0, %c2_i32 : i32
    %c0_17 = arith.constant 0 : index
    %22 = arith.index_cast %21 : i32 to index
    %c0_18 = arith.constant 0 : index
    %c0_19 = arith.constant 0 : index
    %23 = vector.load %arg2[%c0_17, %22, %c0_18, %c0_19] : memref<1x18x16x192xbf16, #tpu.memory_space<vmem>>, vector<1x16x16x192xbf16>
    %24 = vector.shape_cast %23 : vector<1x16x16x192xbf16> to vector<16x16x192xbf16>
    %25 = vector.shape_cast %24 : vector<16x16x192xbf16> to vector<256x192xbf16>
    %c2 = arith.constant 2 : index
    %c0_20 = arith.constant 0 : index
    %c0_21 = arith.constant 0 : index
    %26 = vector.load %arg3[%c2, %c0_20, %c0_21] : memref<3x192x64xbf16, #tpu.memory_space<vmem>>, vector<1x192x64xbf16>
    %27 = vector.shape_cast %26 : vector<1x192x64xbf16> to vector<192x64xbf16>
    %cst_22 = arith.constant dense<0.000000e+00> : vector<256x64xf32>
    %28 = tpu.matmul %25, %27, %cst_22 {dimension_numbers = #tpu.dot_dimension_numbers<[1], [0], [0], [1], [0, 0, 1, 1], [], []>} : vector<256x192xbf16>, vector<192x64xbf16>, vector<256x64xf32> -> vector<256x64xf32>
    %c0_23 = arith.constant 0 : index
    %c0_24 = arith.constant 0 : index
    %29 = vector.load %arg7[%c0_23, %c0_24] : memref<256x64xf32, #tpu.memory_space<vmem>>, vector<256x64xf32>
    %30 = arith.addf %29, %28 : vector<256x64xf32>
    %c0_25 = arith.constant 0 : index
    %c0_26 = arith.constant 0 : index
    %31 = vector.load %arg7[%c0_25, %c0_26] : memref<256x64xf32, #tpu.memory_space<vmem>>, vector<256x64xf32>
    tpu.vector_store %arg7[%c0_25, %c0_26], %30 {strides = array<i32>} : memref<256x64xf32, #tpu.memory_space<vmem>>, vector<256x64xf32>,
    %c0_27 = arith.constant 0 : index
    %c0_28 = arith.constant 0 : index
    %32 = vector.load %arg7[%c0_27, %c0_28] : memref<256x64xf32, #tpu.memory_space<vmem>>, vector<256x64xf32>
    %c0_29 = arith.constant 0 : index
    %c0_30 = arith.constant 0 : index
    %33 = vector.load %arg4[%c0_29, %c0_30] : memref<1x64xf32, #tpu.memory_space<vmem>>, vector<1x64xf32>
    %34 = vector.broadcast %33 : vector<1x64xf32> to vector<256x64xf32>
    %35 = arith.mulf %32, %34 : vector<256x64xf32>
    %c0_31 = arith.constant 0 : index
    %c0_32 = arith.constant 0 : index
    %36 = vector.load %arg5[%c0_31, %c0_32] : memref<1x64xf32, #tpu.memory_space<vmem>>, vector<1x64xf32>
    %37 = vector.broadcast %36 : vector<1x64xf32> to vector<256x64xf32>
    %38 = arith.addf %35, %37 : vector<256x64xf32>
    %cst_33 = arith.constant 0.000000e+00 : f32
    %39 = vector.broadcast %cst_33 : f32 to vector<256x64xf32>
    %40 = arith.maximumf %38, %39 : vector<256x64xf32>
    %41 = arith.truncf %40 : vector<256x64xf32> to vector<256x64xbf16>
    %c0_34 = arith.constant 0 : index
    %c0_35 = arith.constant 0 : index
    %c0_36 = arith.constant 0 : index
    %42 = vector.load %arg6[%c0_34, %c0_35, %c0_36] : memref<1x256x64xbf16, #tpu.memory_space<vmem>>, vector<1x256x64xbf16>
    %43 = vector.shape_cast %42 : vector<1x256x64xbf16> to vector<256x64xbf16>
    %44 = vector.shape_cast %41 : vector<256x64xbf16> to vector<1x256x64xbf16>
    tpu.vector_store %arg6[%c0_34, %c0_35, %c0_36], %44 {strides = array<i32>} : memref<1x256x64xbf16, #tpu.memory_space<vmem>>, vector<1x256x64xbf16>,
    return
  }
  func.func @transform_0(%arg0: i32, %arg1: i32) -> (i32, i32, i32, i32) {
    %c0_i32 = arith.constant 0 : i32
    %c0_i32_0 = arith.constant 0 : i32
    %c0_i32_1 = arith.constant 0 : i32
    %c0_i32_2 = arith.constant 0 : i32
    return %arg0, %c0_i32, %c0_i32_0, %c0_i32_1 : i32, i32, i32, i32
  }
  func.func @transform_1(%arg0: i32, %arg1: i32) -> (i32, i32, i32) {
    %c0_i32 = arith.constant 0 : i32
    %c0_i32_0 = arith.constant 0 : i32
    %c0_i32_1 = arith.constant 0 : i32
    %c0_i32_2 = arith.constant 0 : i32
    return %c0_i32, %c0_i32_0, %c0_i32_1 : i32, i32, i32
  }
  func.func @transform_2(%arg0: i32, %arg1: i32) -> (i32, i32) {
    %c0_i32 = arith.constant 0 : i32
    %c0_i32_0 = arith.constant 0 : i32
    %c0_i32_1 = arith.constant 0 : i32
    return %c0_i32, %c0_i32_0 : i32, i32
  }
  func.func @transform_3(%arg0: i32, %arg1: i32) -> (i32, i32) {
    %c0_i32 = arith.constant 0 : i32
    %c0_i32_0 = arith.constant 0 : i32
    %c0_i32_1 = arith.constant 0 : i32
    return %c0_i32, %c0_i32_0 : i32, i32
  }
  func.func @transform_4(%arg0: i32, %arg1: i32) -> (i32, i32, i32) {
    %c0_i32 = arith.constant 0 : i32
    %c0_i32_0 = arith.constant 0 : i32
    return %arg0, %arg1, %c0_i32 : i32, i32, i32
  }
}

</mosaic_0001>

<llo_original>
// kernel: tpu_custom_call.1
$region0: #{tpu_custom_call.1}
  #allocation0 [shape = 'u32[]', space=smem, size = 0x4, offset = 0x4, fixed_abs, tag = 'smem constant byte address 0x4 - core index']
  #allocation1 [shape = 'u32[144,128]{1,0:T(1,128)}', space=vmem, size = 0x12000, scoped, tag = 'internal scratch']
  #allocation2 [shape = 'f32[256,64]{1,0:T(8,128)}', space=vmem, size = 0x20000, scoped, tag = 'scratch operand']
  %s0 = inlined_call_operand.hbm [shape: bf16[2,18,16,192], index: 0, kind: input, shape index: {}]
  %s1 = inlined_call_operand.vmem [shape: bf16[3,192,64], index: 1, kind: input, shape index: {}]
  %s2 = inlined_call_operand.vmem [shape: f32[1,64], index: 2, kind: input, shape index: {}]
  %s3 = inlined_call_operand.vmem [shape: f32[1,64], index: 3, kind: input, shape index: {}]
  %s4 = inlined_call_operand.vmem [shape: bf16[2,256,64], index: 4, kind: output, shape index: {}]
  %s5 = sld [smem:[#allocation0]]
  $region53: #{tpu_custom_call.1} parent=0
    _
  %s7 = ssub.s32 1, %s5
  %s8 = scalar_select 0, %s7, %s5
  $region1: #{tpu_custom_call.1} parent=0
    #allocation3 [shape = 'u8[294912]{0}', space=vmem, size = 0x48000, scoped, tag = 'input window, operand 0']
    #allocation4 [shape = 's32[2]{0}', space=sflag, size = 0x8, scoped, tag = 'scoped memory for tpu_custom_call.1']
    %9 = vsyncpa [#allocation4], 0
    %s10 = scalar_lea.sflag [#allocation4], 1
    %11 = vsyncpa %s10, 0
    loop: start=0, step=1, limit=4
    $region2: #{tpu_custom_call.1} parent=1 // loop_pre_header
      _
    $region3: #{tpu_custom_call.1} parent=1 // loop_header
      %s13 = sphi 0, %s17
      %p14 = scmp.ge.s32.totalorder %s13, 4
      %s20 = sphi 0, %s32
      %s21 = sphi 0, %s28
      %s22 = sphi 0, %s20
      %s23 = sphi 0, %s21
      %s24 = sphi 0, %s22
      %s25 = sphi 0, %s23
      %s35 = sphi 0, %s37
      %s38 = sphi 0, %s35
      %s39 = sphi 0, %s38
      %s55 = sphi 0, %s39
      %s59 = sphi 0, %s59
      %s61 = sphi 0, %s59
      %s62 = sphi 0, %s61
      %s76 = sphi 0, %s62
      %s80 = sphi 0, %s80
      %s82 = sphi 0, %s80
      %s83 = sphi 0, %s82
      %s97 = sphi 0, %s83
      %s101 = sphi 0, %s101
      %s103 = sphi 0, %s101
      %s104 = sphi 0, %s103
      %s118 = sphi 0, %s104
      %s126 = sphi 0, %s128
      %s129 = sphi 0, %s126
      %s130 = sphi 0, %s129
      %s146 = sphi 0, %s130
    $region4: #{tpu_custom_call.1} parent=1 // loop_header_branch
      %16 = sbr.rel (%p14) target = $region8
    $region5: #{tpu_custom_call.1} parent=1 // loop_body
      %s18 = ssub.s32 %s13, 1
      %s19 = ssub.s32 %s13, 2
      %s26 = sadd.s32 1, %s21
      %p27 = scmp.ge.s32.totalorder %s26, 1
      %s28 = scalar_select %p27, 0, %s26
      %s29 = sadd.s32 1, %s20
      %s30 = scalar_select %p27, %s29, %s20
      %p31 = scmp.ge.s32.totalorder %s30, 2
      %s32 = scalar_select %p31, 0, %s30
      %s33 = ssub.s32 %s20, %s32
      %p34 = scmp.eq.s32.totalorder %s33, 0
      %s36 = sadd.s32 %s35, 1
      %s37 = scalar_select %p34, %s35, %s36
      %p40 = pneg %p34
      %p41 = scmp.eq.s32.totalorder %s13, 1
      %p42 = por %p40, %p41
      %p43 = scmp.ne.s32.totalorder %s35, %s38
      %p44 = scmp.eq.s32.totalorder %s13, 0
      %p45 = por %p43, %p44
      %p46 = scmp.ne.s32.totalorder %s35, %s38
      %p47 = scmp.eq.s32.totalorder %s18, 1
      %p48 = por %p46, %p47
      %p49 = scmp.ne.s32.totalorder %s38, %s39
      %p50 = scmp.eq.s32.totalorder %s18, 0
      %p51 = por %p49, %p50
      %p52 = scmp.ne.s32.totalorder %s38, %s39
      %p53 = scmp.eq.s32.totalorder %s19, 1
      %p54 = por %p52, %p53
      %p56 = scmp.ne.s32.totalorder %s39, %s55
      %p57 = scmp.eq.s32.totalorder %s19, 0
      %p58 = por %p56, %p57
      %s60 = sadd.s32 %s59, 1
      %p63 = scmp.eq.s32.totalorder %s13, 1
      %p64 = scmp.ne.s32.totalorder %s59, %s61
      %p65 = scmp.eq.s32.totalorder %s13, 0
      %p66 = por %p64, %p65
      %p67 = scmp.ne.s32.totalorder %s59, %s61
      %p68 = scmp.eq.s32.totalorder %s18, 1
      %p69 = por %p67, %p68
      %p70 = scmp.ne.s32.totalorder %s61, %s62
      %p71 = scmp.eq.s32.totalorder %s18, 0
      %p72 = por %p70, %p71
      %p73 = scmp.ne.s32.totalorder %s61, %s62
      %p74 = scmp.eq.s32.totalorder %s19, 1
      %p75 = por %p73, %p74
      %p77 = scmp.ne.s32.totalorder %s62, %s76
      %p78 = scmp.eq.s32.totalorder %s19, 0
      %p79 = por %p77, %p78
      %s81 = sadd.s32 %s80, 1
      %p84 = scmp.eq.s32.totalorder %s13, 1
      %p85 = scmp.ne.s32.totalorder %s80, %s82
      %p86 = scmp.eq.s32.totalorder %s13, 0
      %p87 = por %p85, %p86
      %p88 = scmp.ne.s32.totalorder %s80, %s82
      %p89 = scmp.eq.s32.totalorder %s18, 1
      %p90 = por %p88, %p89
      %p91 = scmp.ne.s32.totalorder %s82, %s83
      %p92 = scmp.eq.s32.totalorder %s18, 0
      %p93 = por %p91, %p92
      %p94 = scmp.ne.s32.totalorder %s82, %s83
      %p95 = scmp.eq.s32.totalorder %s19, 1
      %p96 = por %p94, %p95
      %p98 = scmp.ne.s32.totalorder %s83, %s97
      %p99 = scmp.eq.s32.totalorder %s19, 0
      %p100 = por %p98, %p99
      %s102 = sadd.s32 %s101, 1
      %p105 = scmp.eq.s32.totalorder %s13, 1
      %p106 = scmp.ne.s32.totalorder %s101, %s103
      %p107 = scmp.eq.s32.totalorder %s13, 0
      %p108 = por %p106, %p107
      %p109 = scmp.ne.s32.totalorder %s101, %s103
      %p110 = scmp.eq.s32.totalorder %s18, 1
      %p111 = por %p109, %p110
      %p112 = scmp.ne.s32.totalorder %s103, %s104
      %p113 = scmp.eq.s32.totalorder %s18, 0
      %p114 = por %p112, %p113
      %p115 = scmp.ne.s32.totalorder %s103, %s104
      %p116 = scmp.eq.s32.totalorder %s19, 1
      %p117 = por %p115, %p116
      %p119 = scmp.ne.s32.totalorder %s104, %s118
      %p120 = scmp.eq.s32.totalorder %s19, 0
      %p121 = por %p119, %p120
      %s122 = ssub.s32 %s20, %s32
      %s123 = ssub.s32 %s21, %s28
      %s124 = sor.u32 %s122, %s123
      %p125 = scmp.eq.s32.totalorder %s124, 0
      %s127 = sadd.s32 %s126, 1
      %s128 = scalar_select %p125, %s126, %s127
      %p131 = pneg %p125
      %p132 = scmp.eq.s32.totalorder %s13, 1
      %p133 = por %p131, %p132
      %p134 = scmp.ne.s32.totalorder %s126, %s129
      %p135 = scmp.eq.s32.totalorder %s13, 0
      %p136 = por %p134, %p135
      %p137 = scmp.ne.s32.totalorder %s126, %s129
      %p138 = scmp.eq.s32.totalorder %s18, 1
      %p139 = por %p137, %p138
      %p140 = scmp.ne.s32.totalorder %s129, %s130
      %p141 = scmp.eq.s32.totalorder %s18, 0
      %p142 = por %p140, %p141
      %p143 = scmp.ne.s32.totalorder %s129, %s130
      %p144 = scmp.eq.s32.totalorder %s19, 1
      %p145 = por %p143, %p144
      %p147 = scmp.ne.s32.totalorder %s130, %s146
      %p148 = scmp.eq.s32.totalorder %s19, 0
      %p149 = por %p147, %p148
      %p150 = scmp.le.s32.totalorder 1, %s13
      %p151 = scmp.lt.s32.totalorder %s13, 3
      %p152 = pnand %p150, %p151
      %p153 = pneg %p152
      // Predicated region
      $region9: #{tpu_custom_call.1} parent=5 // pred_check
        _
      $region10: #{tpu_custom_call.1} parent=5 // pred_check_branch
        %155 = sbr.rel (%p152) target = $region12
      $region11: #{tpu_custom_call.1} parent=5 // pred_region
        %s156 = ssub.s32 %s13, 1
        // Predicated region
        $region13: #{tpu_custom_call.1} parent=11 // pred_check
          %p157 = pneg %p72
        $region14: #{tpu_custom_call.1} parent=11 // pred_check_branch
          %159 = sbr.rel (%p157) target = $region16
        $region15: #{tpu_custom_call.1} parent=11 // pred_region
          _
        $region16: #{tpu_custom_call.1} parent=11 // pred_fallthru
          _
        // Predicated region
        $region17: #{tpu_custom_call.1} parent=11 // pred_check
          %p160 = pneg %p93
        $region18: #{tpu_custom_call.1} parent=11 // pred_check_branch
          %162 = sbr.rel (%p160) target = $region20
        $region19: #{tpu_custom_call.1} parent=11 // pred_region
          _
        $region20: #{tpu_custom_call.1} parent=11 // pred_fallthru
          _
        // Predicated region
        $region21: #{tpu_custom_call.1} parent=11 // pred_check
          %p163 = pneg %p114
        $region22: #{tpu_custom_call.1} parent=11 // pred_check_branch
          %165 = sbr.rel (%p163) target = $region24
        $region23: #{tpu_custom_call.1} parent=11 // pred_region
          _
        $region24: #{tpu_custom_call.1} parent=11 // pred_fallthru
          _
      $region12: #{tpu_custom_call.1} parent=5 // pred_fallthru
        _
      %p166 = scmp.lt.s32.totalorder %s13, 2
      // Predicated region
      $region25: #{tpu_custom_call.1} parent=5 // pred_check
        %p167 = pneg %p166
      $region26: #{tpu_custom_call.1} parent=5 // pred_check_branch
        %169 = sbr.rel (%p167) target = $region28
      $region27: #{tpu_custom_call.1} parent=5 // pred_region
        // Predicated region
        $region29: #{tpu_custom_call.1} parent=27 // pred_check
          %p170 = pneg %p45
        $region30: #{tpu_custom_call.1} parent=27 // pred_check_branch
          %172 = sbr.rel (%p170) target = $region32
        $region31: #{tpu_custom_call.1} parent=27 // pred_region
          %s173 = sand.u32 %s35, 1
          %s174 = scalar_lea.sflag [#allocation4], %s173
          %s175 = sand.u32 %s35, 1
          %s176 = smul.addr %s175, 288
          %s177 = scalar_lea.vmem [#allocation3], %s176
          %s179 = ssub.s32 4608, 4608
          %180 = vsyncadd %s174, %s179
          %s181 = smul.addr %s20, 72
          %s182 = smul.addr %s181, 64
          %s183 = scalar_lea.hbm %s0, %s182
          %s184 = sshll.u32 %s177, 4
          %s185 = int_to_ptr.vmem [resolvable:$true] %s184
          %190 = dma.hbm_to_vmem [thread:$0]  %s183, 4608, %s185, %s174, 128, 128, 8
        $region32: #{tpu_custom_call.1} parent=27 // pred_fallthru
          _
      $region28: #{tpu_custom_call.1} parent=5 // pred_fallthru
        _
      %p191 = scmp.le.s32.totalorder 1, %s13
      %p192 = scmp.lt.s32.totalorder %s13, 3
      %p193 = pnand %p191, %p192
      %p194 = pneg %p193
      // Predicated region
      $region33: #{tpu_custom_call.1} parent=5 // pred_check
        _
      $region34: #{tpu_custom_call.1} parent=5 // pred_check_branch
        %196 = sbr.rel (%p193) target = $region36
      $region35: #{tpu_custom_call.1} parent=5 // pred_region
        %s197 = ssub.s32 %s13, 1
        %s198 = sand.u32 %s38, 1
        %s199 = scalar_lea.sflag [#allocation4], %s198
        %s200 = sand.u32 %s38, 1
        %s201 = smul.addr %s200, 288
        %s202 = scalar_lea.vmem [#allocation3], %s201
        // Predicated region
        $region37: #{tpu_custom_call.1} parent=35 // pred_check
          %p203 = pneg %p51
        $region38: #{tpu_custom_call.1} parent=35 // pred_check_branch
          %205 = sbr.rel (%p203) target = $region40
        $region39: #{tpu_custom_call.1} parent=35 // pred_region
          %206 = dma.done %s199, 4608
        $region40: #{tpu_custom_call.1} parent=35 // pred_fallthru
          _
        %s207 = sand.u32 %s38, 1
        %s208 = scalar_lea.sflag [#allocation4], %s207
        %s209 = sand.u32 %s38, 1
        %s210 = smul.addr %s209, 288
        %s211 = scalar_lea.vmem [#allocation3], %s210
        %p212 = pneg %p51
        %p213 = pneg %p48
        %p214 = pneg %p72
        %p215 = pneg %p69
        %p216 = pneg %p93
        %p217 = pneg %p90
        %p218 = pneg %p114
        %p219 = pneg %p111
        %p220 = pneg %p142
        %p221 = pneg %p139
        %s222 = smul.u32 32, %s23
        %p223 = scmp.lt.s32.totalorder %s22, 1
        %s224 = scalar_select %p223, %s22, 1
        %p225 = scmp.lt.s32.totalorder %s222, 31
        %s226 = scalar_select %p225, %s222, 31
        %s227 = smul.addr %s224, 32
        %s228 = sadd.s32 %s226, %s227
        %s229 = smul.addr %s228, 4
        %s230 = scalar_lea.vmem %s4, %s229
        %s231 = smul.u32 32, %s23
        %p232 = scmp.lt.s32.totalorder %s22, 1
        %s233 = scalar_select %p232, %s22, 1
        %p234 = scmp.lt.s32.totalorder %s231, 31
        %s235 = scalar_select %p234, %s231, 31
        %s236 = smul.addr %s233, 32
        %s237 = sadd.s32 %s235, %s236
        %s238 = smul.addr %s237, 4
        %s239 = scalar_lea.vmem %s4, %s238
        %s240 = smul.u32 32, %s23
        %s242 = smul.u32 %s23, 16
        %s243 = smul.u32 %s242, 4
        %s244 = smul.addr %s243, 4
        %s245 = scalar_lea.vmem %s202, %s244 [#allocation3]
        %v246 = vld [vmem:[%s245] sm:$0xff]
        %v247 = vld [vmem:[%s245 + $0x8] sm:$0xff]
        %v248 = vld [vmem:[%s245 + $0x10] sm:$0xff]
        %v249 = vld [vmem:[%s245 + $0x18] sm:$0xff]
        %v250 = vld [vmem:[%s245 + $0x20] sm:$0xff]
        %v251 = vld [vmem:[%s245 + $0x28] sm:$0xff]
        %v252 = vld [vmem:[%s245 + $0x30] sm:$0xff]
        %v253 = vld [vmem:[%s245 + $0x38] sm:$0xff]
        %v254 = vld [vmem:[%s245 + $0x40] sm:$0xff]
        %v255 = vld [vmem:[%s245 + $0x48] sm:$0xff]
        %v256 = vld [vmem:[%s245 + $0x50] sm:$0xff]
        %v257 = vld [vmem:[%s245 + $0x58] sm:$0xff]
        %v258 = vld [vmem:[%s245 + $0x60] sm:$0xff]
        %v259 = vld [vmem:[%s245 + $0x68] sm:$0xff]
        %v260 = vld [vmem:[%s245 + $0x70] sm:$0xff]
        %v261 = vld [vmem:[%s245 + $0x78] sm:$0xff]
        %v262 = vld [vmem:[%s245 + $0x80] sm:$0xff]
        %v263 = vld [vmem:[%s245 + $0x88] sm:$0xff]
        %v264 = vld [vmem:[%s245 + $0x90] sm:$0xff]
        %v265 = vld [vmem:[%s245 + $0x98] sm:$0xff]
        %v266 = vld [vmem:[%s245 + $0xa0] sm:$0xff]
        %v267 = vld [vmem:[%s245 + $0xa8] sm:$0xff]
        %v268 = vld [vmem:[%s245 + $0xb0] sm:$0xff]
        %v269 = vld [vmem:[%s245 + $0xb8] sm:$0xff]
        %v270 = vld [vmem:[%s245 + $0xc0] sm:$0xff]
        %v271 = vld [vmem:[%s245 + $0xc8] sm:$0xff]
        %v272 = vld [vmem:[%s245 + $0xd0] sm:$0xff]
        %v273 = vld [vmem:[%s245 + $0xd8] sm:$0xff]
        %v274 = vld [vmem:[%s245 + $0xe0] sm:$0xff]
        %v275 = vld [vmem:[%s245 + $0xe8] sm:$0xff]
        %v276 = vld [vmem:[%s245 + $0xf0] sm:$0xff]
        %v277 = vld [vmem:[%s245 + $0xf8] sm:$0xff]
        %v278 = vld [vmem:[%s1] sm:$0xf]
        %v279 = vld [vmem:[%s1 + $0x4] sm:$0xf]
        %v280 = vld [vmem:[%s1 + $0x8] sm:$0xf]
        %v281 = vld [vmem:[%s1 + $0xc] sm:$0xf]
        %v282 = vld [vmem:[%s1 + $0x10] sm:$0xf]
        %v283 = vld [vmem:[%s1 + $0x14] sm:$0xf]
        %v284 = vld [vmem:[%s1 + $0x18] sm:$0xf]
        %v285 = vld [vmem:[%s1 + $0x1c] sm:$0xf]
        %v286 = vld [vmem:[%s1 + $0x20] sm:$0xf]
        %v287 = vld [vmem:[%s1 + $0x24] sm:$0xf]
        %v288 = vld [vmem:[%s1 + $0x28] sm:$0xf]
        %v289 = vld [vmem:[%s1 + $0x2c] sm:$0xf]
        %v290 = vld [vmem:[%s1 + $0x30] sm:$0xf]
        %v291 = vld [vmem:[%s1 + $0x34] sm:$0xf]
        %v292 = vld [vmem:[%s1 + $0x38] sm:$0xf]
        %v293 = vld [vmem:[%s1 + $0x3c] sm:$0xf]
        %v294 = vld [vmem:[%s1 + $0x40] sm:$0xf]
        %v295 = vld [vmem:[%s1 + $0x44] sm:$0xf]
        %v296 = vld [vmem:[%s1 + $0x48] sm:$0xf]
        %v297 = vld [vmem:[%s1 + $0x4c] sm:$0xf]
        %v298 = vld [vmem:[%s1 + $0x50] sm:$0xf]
        %v299 = vld [vmem:[%s1 + $0x54] sm:$0xf]
        %v300 = vld [vmem:[%s1 + $0x58] sm:$0xf]
        %v301 = vld [vmem:[%s1 + $0x5c] sm:$0xf]
        %v334 = vunpack.c.l.b16 %v246
        %v335 = vunpack.c.h.b16 %v246
        %v336 = vunpack.c.l.b16 %v247
        %v337 = vunpack.c.h.b16 %v247
        %v338 = vunpack.c.l.b16 %v248
        %v339 = vunpack.c.h.b16 %v248
        %v340 = vunpack.c.l.b16 %v249
        %v341 = vunpack.c.h.b16 %v249
        %v342 = vunpack.c.l.b16 %v250
        %v343 = vunpack.c.h.b16 %v250
        %v344 = vunpack.c.l.b16 %v251
        %v345 = vunpack.c.h.b16 %v251
        %v346 = vunpack.c.l.b16 %v252
        %v347 = vunpack.c.h.b16 %v252
        %v348 = vunpack.c.l.b16 %v253
        %v349 = vunpack.c.h.b16 %v253
        %v350 = vunpack.c.l.b16 %v254
        %v351 = vunpack.c.h.b16 %v254
        %v352 = vunpack.c.l.b16 %v255
        %v353 = vunpack.c.h.b16 %v255
        %v354 = vunpack.c.l.b16 %v256
        %v355 = vunpack.c.h.b16 %v256
        %v356 = vunpack.c.l.b16 %v257
        %v357 = vunpack.c.h.b16 %v257
        %v358 = vunpack.c.l.b16 %v258
        %v359 = vunpack.c.h.b16 %v258
        %v360 = vunpack.c.l.b16 %v259
        %v361 = vunpack.c.h.b16 %v259
        %v362 = vunpack.c.l.b16 %v260
        %v363 = vunpack.c.h.b16 %v260
        %v364 = vunpack.c.l.b16 %v261
        %v365 = vunpack.c.h.b16 %v261
        %v366 = vunpack.c.l.b16 %v262
        %v367 = vunpack.c.h.b16 %v262
        %v368 = vunpack.c.l.b16 %v263
        %v369 = vunpack.c.h.b16 %v263
        %v370 = vunpack.c.l.b16 %v264
        %v371 = vunpack.c.h.b16 %v264
        %v372 = vunpack.c.l.b16 %v265
        %v373 = vunpack.c.h.b16 %v265
        %v374 = vunpack.c.l.b16 %v266
        %v375 = vunpack.c.h.b16 %v266
        %v376 = vunpack.c.l.b16 %v267
        %v377 = vunpack.c.h.b16 %v267
        %v378 = vunpack.c.l.b16 %v268
        %v379 = vunpack.c.h.b16 %v268
        %v380 = vunpack.c.l.b16 %v269
        %v381 = vunpack.c.h.b16 %v269
        %v382 = vunpack.c.l.b16 %v270
        %v383 = vunpack.c.h.b16 %v270
        %v384 = vunpack.c.l.b16 %v271
        %v385 = vunpack.c.h.b16 %v271
        %v386 = vunpack.c.l.b16 %v272
        %v387 = vunpack.c.h.b16 %v272
        %v388 = vunpack.c.l.b16 %v273
        %v389 = vunpack.c.h.b16 %v273
        %v390 = vunpack.c.l.b16 %v274
        %v391 = vunpack.c.h.b16 %v274
        %v392 = vunpack.c.l.b16 %v275
        %v393 = vunpack.c.h.b16 %v275
        %v394 = vunpack.c.l.b16 %v276
        %v395 = vunpack.c.h.b16 %v276
        %v396 = vunpack.c.l.b16 %v277
        %v397 = vunpack.c.h.b16 %v277
        %v398 = vpack.c.b16 %v336, %v334
        %v399 = vpack.c.b16 %v337, %v335
        %v400 = vpack.c.b16 %v340, %v338
        %v401 = vpack.c.b16 %v341, %v339
        %v402 = vpack.c.b16 %v344, %v342
        %v403 = vpack.c.b16 %v345, %v343
        %v404 = vpack.c.b16 %v348, %v346
        %v405 = vpack.c.b16 %v349, %v347
        %v406 = vpack.c.b16 %v352, %v350
        %v407 = vpack.c.b16 %v353, %v351
        %v408 = vpack.c.b16 %v356, %v354
        %v409 = vpack.c.b16 %v357, %v355
        %v410 = vpack.c.b16 %v360, %v358
        %v411 = vpack.c.b16 %v361, %v359
        %v412 = vpack.c.b16 %v364, %v362
        %v413 = vpack.c.b16 %v365, %v363
        %v414 = vpack.c.b16 %v368, %v366
        %v415 = vpack.c.b16 %v369, %v367
        %v416 = vpack.c.b16 %v372, %v370
        %v417 = vpack.c.b16 %v373, %v371
        %v418 = vpack.c.b16 %v376, %v374
        %v419 = vpack.c.b16 %v377, %v375
        %v420 = vpack.c.b16 %v380, %v378
        %v421 = vpack.c.b16 %v381, %v379
        %v422 = vpack.c.b16 %v384, %v382
        %v423 = vpack.c.b16 %v385, %v383
        %v424 = vpack.c.b16 %v388, %v386
        %v425 = vpack.c.b16 %v389, %v387
        %v426 = vpack.c.b16 %v392, %v390
        %v427 = vpack.c.b16 %v393, %v391
        %v428 = vpack.c.b16 %v396, %v394
        %v429 = vpack.c.b16 %v397, %v395
        %v470 = vunpack.c.l.b16 %v278
        %v471 = vunpack.c.l.b16 %v279
        %v472 = vunpack.c.l.b16 %v280
        %v473 = vunpack.c.l.b16 %v281
        %v474 = vunpack.c.l.b16 %v282
        %v475 = vunpack.c.l.b16 %v283
        %v476 = vunpack.c.l.b16 %v284
        %v477 = vunpack.c.l.b16 %v285
        %v478 = vunpack.c.l.b16 %v286
        %v479 = vunpack.c.l.b16 %v287
        %v480 = vunpack.c.l.b16 %v288
        %v481 = vunpack.c.l.b16 %v289
        %v482 = vunpack.c.l.b16 %v290
        %v483 = vunpack.c.l.b16 %v291
        %v484 = vunpack.c.l.b16 %v292
        %v485 = vunpack.c.l.b16 %v293
        %v486 = vunpack.c.l.b16 %v294
        %v487 = vunpack.c.l.b16 %v295
        %v488 = vunpack.c.l.b16 %v296
        %v489 = vunpack.c.l.b16 %v297
        %v490 = vunpack.c.l.b16 %v298
        %v491 = vunpack.c.l.b16 %v299
        %v492 = vunpack.c.l.b16 %v300
        %v493 = vunpack.c.l.b16 %v301
        %v494 = vpack.c.b16 %v471, %v470
        %v495 = vpack.c.b16 %v473, %v472
        %v496 = vpack.c.b16 %v475, %v474
        %v497 = vpack.c.b16 %v477, %v476
        %v498 = vpack.c.b16 %v479, %v478
        %v499 = vpack.c.b16 %v481, %v480
        %v500 = vpack.c.b16 %v483, %v482
        %v501 = vpack.c.b16 %v485, %v484
        %v502 = vpack.c.b16 %v487, %v486
        %v503 = vpack.c.b16 %v489, %v488
        %v504 = vpack.c.b16 %v491, %v490
        %v505 = vpack.c.b16 %v493, %v492
        %vm518 = vcmask 523264
        %v520 = vsel %vm518, %v399, 0
        %v523 = vsel %vm518, %v401, 0
        %v526 = vsel %vm518, %v403, 0
        %v529 = vsel %vm518, %v405, 0
        %v532 = vsel %vm518, %v407, 0
        %v535 = vsel %vm518, %v409, 0
        %v538 = vsel %vm518, %v411, 0
        %v541 = vsel %vm518, %v413, 0
        %v544 = vsel %vm518, %v415, 0
        %v547 = vsel %vm518, %v417, 0
        %v550 = vsel %vm518, %v419, 0
        %v553 = vsel %vm518, %v421, 0
        %v556 = vsel %vm518, %v423, 0
        %v559 = vsel %vm518, %v425, 0
        %v562 = vsel %vm518, %v427, 0
        %v565 = vsel %vm518, %v429, 0
        %567 = vmatprep.subr.bf16.mxu0 0
        %568 = vmatpush1.bf16.msra.mxu0 %v494
        %569 = vmatprep.subr.bf16.mxu0 0
        %570 = vmatpush1.bf16.msra.mxu0 %v495
        %571 = vmatprep.subr.bf16.mxu0 0
        %572 = vmatpush1.bf16.msra.mxu0 %v496
        %573 = vmatprep.subr.bf16.mxu0 0
        %574 = vmatpush1.bf16.msra.mxu0 %v497
        %575 = vmatprep.subr.bf16.mxu0 0
        %576 = vmatpush1.bf16.msra.mxu0 %v498
        %577 = vmatprep.subr.bf16.mxu0 0
        %578 = vmatpush1.bf16.msra.mxu0 %v499
        %579 = vmatprep.subr.bf16.mxu0 0
        %580 = vmatpush1.bf16.msra.mxu0 %v500
        %581 = vmatprep.subr.bf16.mxu0 0
        %582 = vmatpush1.bf16.msra.mxu0 %v501
        %583 = vmatprep.subr.bf16.mxu0 0
        %584 = vmatpush1.bf16.msra.mxu0 %v502
        %585 = vmatprep.subr.bf16.mxu0 0
        %586 = vmatpush1.bf16.msra.mxu0 %v503
        %587 = vmatprep.subr.bf16.mxu0 0
        %588 = vmatpush1.bf16.msra.mxu0 %v504
        %589 = vmatprep.subr.bf16.mxu0 0
        %590 = vmatpush1.bf16.msra.mxu0 %v505
        %591 = vmatprep.subr.bf16.mxu0 0
        %592 = vmatpush1.bf16.msra.mxu0 0
        %593 = vmatprep.subr.bf16.mxu0 0
        %594 = vmatpush1.bf16.msra.mxu0 0
        %595 = vmatprep.subr.bf16.mxu0 0
        %596 = vmatpush1.bf16.msra.mxu0 0
        %597 = vmatprep.subr.bf16.mxu0 0
        %598 = vmatpush1.bf16.msra.mxu0 0
        %599 = vmatprep.mubr.bf16.mxu0 %v520
        %600 = vmatmul.mubr.bf16.gmra.mrb[0].mxu0 %v398
        %v601 = vpop.f32.mrb[0].mxu0
        %v602 = vadd.f32 0.0, %v601
        %v603 = vpop.f32.mrb[0].mxu0
        %v604 = vpop.f32.mrb[0].mxu0
        %v605 = vadd.f32 0.0, %v604
        %v606 = vpop.f32.mrb[0].mxu0
        %607 = vmatprep.mubr.bf16.mxu0 %v523
        %608 = vmatmul.mubr.bf16.gmra.mrb[0].mxu0 %v400
        %v609 = vpop.f32.mrb[0].mxu0
        %v610 = vadd.f32 0.0, %v609
        %v611 = vpop.f32.mrb[0].mxu0
        %v612 = vpop.f32.mrb[0].mxu0
        %v613 = vadd.f32 0.0, %v612
        %v614 = vpop.f32.mrb[0].mxu0
        %615 = vmatprep.mubr.bf16.mxu0 %v526
        %616 = vmatmul.mubr.bf16.gmra.mrb[0].mxu0 %v402
        %v617 = vpop.f32.mrb[0].mxu0
        %v618 = vadd.f32 0.0, %v617
        %v619 = vpop.f32.mrb[0].mxu0
        %v620 = vpop.f32.mrb[0].mxu0
        %v621 = vadd.f32 0.0, %v620
        %v622 = vpop.f32.mrb[0].mxu0
        %623 = vmatprep.mubr.bf16.mxu0 %v529
        %624 = vmatmul.mubr.bf16.gmra.mrb[0].mxu0 %v404
        %v625 = vpop.f32.mrb[0].mxu0
        %v626 = vadd.f32 0.0, %v625
        %v627 = vpop.f32.mrb[0].mxu0
        %v628 = vpop.f32.mrb[0].mxu0
        %v629 = vadd.f32 0.0, %v628
        %v630 = vpop.f32.mrb[0].mxu0
        %631 = vmatprep.mubr.bf16.mxu0 %v532
        %632 = vmatmul.mubr.bf16.gmra.mrb[0].mxu0 %v406
        %v633 = vpop.f32.mrb[0].mxu0
        %v634 = vadd.f32 0.0, %v633
        %v635 = vpop.f32.mrb[0].mxu0
        %v636 = vpop.f32.mrb[0].mxu0
        %v637 = vadd.f32 0.0, %v636
        %v638 = vpop.f32.mrb[0].mxu0
        %639 = vmatprep.mubr.bf16.mxu0 %v535
        %640 = vmatmul.mubr.bf16.gmra.mrb[0].mxu0 %v408
        %v641 = vpop.f32.mrb[0].mxu0
        %v642 = vadd.f32 0.0, %v641
        %v643 = vpop.f32.mrb[0].mxu0
        %v644 = vpop.f32.mrb[0].mxu0
        %v645 = vadd.f32 0.0, %v644
        %v646 = vpop.f32.mrb[0].mxu0
        %647 = vmatprep.mubr.bf16.mxu0 %v538
        %648 = vmatmul.mubr.bf16.gmra.mrb[0].mxu0 %v410
        %v649 = vpop.f32.mrb[0].mxu0
        %v650 = vadd.f32 0.0, %v649
        %v651 = vpop.f32.mrb[0].mxu0
        %v652 = vpop.f32.mrb[0].mxu0
        %v653 = vadd.f32 0.0, %v652
        %v654 = vpop.f32.mrb[0].mxu0
        %655 = vmatprep.mubr.bf16.mxu0 %v541
        %656 = vmatmul.mubr.bf16.gmra.mrb[0].mxu0 %v412
        %v657 = vpop.f32.mrb[0].mxu0
        %v658 = vadd.f32 0.0, %v657
        %v659 = vpop.f32.mrb[0].mxu0
        %v660 = vpop.f32.mrb[0].mxu0
        %v661 = vadd.f32 0.0, %v660
        %v662 = vpop.f32.mrb[0].mxu0
        %663 = vmatprep.mubr.bf16.mxu0 %v544
        %664 = vmatmul.mubr.bf16.gmra.mrb[0].mxu0 %v414
        %v665 = vpop.f32.mrb[0].mxu0
        %v666 = vadd.f32 0.0, %v665
        %v667 = vpop.f32.mrb[0].mxu0
        %v668 = vpop.f32.mrb[0].mxu0
        %v669 = vadd.f32 0.0, %v668
        %v670 = vpop.f32.mrb[0].mxu0
        %671 = vmatprep.mubr.bf16.mxu0 %v547
        %672 = vmatmul.mubr.bf16.gmra.mrb[0].mxu0 %v416
        %v673 = vpop.f32.mrb[0].mxu0
        %v674 = vadd.f32 0.0, %v673
        %v675 = vpop.f32.mrb[0].mxu0
        %v676 = vpop.f32.mrb[0].mxu0
        %v677 = vadd.f32 0.0, %v676
        %v678 = vpop.f32.mrb[0].mxu0
        %679 = vmatprep.mubr.bf16.mxu0 %v550
        %680 = vmatmul.mubr.bf16.gmra.mrb[0].mxu0 %v418
        %v681 = vpop.f32.mrb[0].mxu0
        %v682 = vadd.f32 0.0, %v681
        %v683 = vpop.f32.mrb[0].mxu0
        %v684 = vpop.f32.mrb[0].mxu0
        %v685 = vadd.f32 0.0, %v684
        %v686 = vpop.f32.mrb[0].mxu0
        %687 = vmatprep.mubr.bf16.mxu0 %v553
        %688 = vmatmul.mubr.bf16.gmra.mrb[0].mxu0 %v420
        %v689 = vpop.f32.mrb[0].mxu0
        %v690 = vadd.f32 0.0, %v689
        %v691 = vpop.f32.mrb[0].mxu0
        %v692 = vpop.f32.mrb[0].mxu0
        %v693 = vadd.f32 0.0, %v692
        %v694 = vpop.f32.mrb[0].mxu0
        %695 = vmatprep.mubr.bf16.mxu0 %v556
        %696 = vmatmul.mubr.bf16.gmra.mrb[0].mxu0 %v422
        %v697 = vpop.f32.mrb[0].mxu0
        %v698 = vadd.f32 0.0, %v697
        %v699 = vpop.f32.mrb[0].mxu0
        %v700 = vpop.f32.mrb[0].mxu0
        %v701 = vadd.f32 0.0, %v700
        %v702 = vpop.f32.mrb[0].mxu0
        %703 = vmatprep.mubr.bf16.mxu0 %v559
        %704 = vmatmul.mubr.bf16.gmra.mrb[0].mxu0 %v424
        %v705 = vpop.f32.mrb[0].mxu0
        %v706 = vadd.f32 0.0, %v705
        %v707 = vpop.f32.mrb[0].mxu0
        %v708 = vpop.f32.mrb[0].mxu0
        %v709 = vadd.f32 0.0, %v708
        %v710 = vpop.f32.mrb[0].mxu0
        %711 = vmatprep.mubr.bf16.mxu0 %v562
        %712 = vmatmul.mubr.bf16.gmra.mrb[0].mxu0 %v426
        %v713 = vpop.f32.mrb[0].mxu0
        %v714 = vadd.f32 0.0, %v713
        %v715 = vpop.f32.mrb[0].mxu0
        %v716 = vpop.f32.mrb[0].mxu0
        %v717 = vadd.f32 0.0, %v716
        %v718 = vpop.f32.mrb[0].mxu0
        %719 = vmatprep.mubr.bf16.mxu0 %v565
        %720 = vmatmul.mubr.bf16.gmra.mrb[0].mxu0 %v428
        %v721 = vpop.f32.mrb[0].mxu0
        %v722 = vadd.f32 0.0, %v721
        %v723 = vpop.f32.mrb[0].mxu0
        %v724 = vpop.f32.mrb[0].mxu0
        %v725 = vadd.f32 0.0, %v724
        %v726 = vpop.f32.mrb[0].mxu0
        %727 = vdwg.mxu0
        %728 = vst.msk [vmem:[#allocation2] sm:$0xff] %vm518, %v602
        %729 = vst.msk [vmem:[#allocation2 + $0x8] sm:$0xff] %vm518, %v605
        %730 = vst.msk [vmem:[#allocation2 + $0x10] sm:$0xff] %vm518, %v610
        %731 = vst.msk [vmem:[#allocation2 + $0x18] sm:$0xff] %vm518, %v613
        %732 = vst.msk [vmem:[#allocation2 + $0x20] sm:$0xff] %vm518, %v618
        %733 = vst.msk [vmem:[#allocation2 + $0x28] sm:$0xff] %vm518, %v621
        %734 = vst.msk [vmem:[#allocation2 + $0x30] sm:$0xff] %vm518, %v626
        %735 = vst.msk [vmem:[#allocation2 + $0x38] sm:$0xff] %vm518, %v629
        %736 = vst.msk [vmem:[#allocation2 + $0x40] sm:$0xff] %vm518, %v634
        %737 = vst.msk [vmem:[#allocation2 + $0x48] sm:$0xff] %vm518, %v637
        %738 = vst.msk [vmem:[#allocation2 + $0x50] sm:$0xff] %vm518, %v642
        %739 = vst.msk [vmem:[#allocation2 + $0x58] sm:$0xff] %vm518, %v645
        %740 = vst.msk [vmem:[#allocation2 + $0x60] sm:$0xff] %vm518, %v650
        %741 = vst.msk [vmem:[#allocation2 + $0x68] sm:$0xff] %vm518, %v653
        %742 = vst.msk [vmem:[#allocation2 + $0x70] sm:$0xff] %vm518, %v658
        %743 = vst.msk [vmem:[#allocation2 + $0x78] sm:$0xff] %vm518, %v661
        %744 = vst.msk [vmem:[#allocation2 + $0x80] sm:$0xff] %vm518, %v666
        %745 = vst.msk [vmem:[#allocation2 + $0x88] sm:$0xff] %vm518, %v669
        %746 = vst.msk [vmem:[#allocation2 + $0x90] sm:$0xff] %vm518, %v674
        %747 = vst.msk [vmem:[#allocation2 + $0x98] sm:$0xff] %vm518, %v677
        %748 = vst.msk [vmem:[#allocation2 + $0xa0] sm:$0xff] %vm518, %v682
        %749 = vst.msk [vmem:[#allocation2 + $0xa8] sm:$0xff] %vm518, %v685
        %750 = vst.msk [vmem:[#allocation2 + $0xb0] sm:$0xff] %vm518, %v690
        %751 = vst.msk [vmem:[#allocation2 + $0xb8] sm:$0xff] %vm518, %v693
        %752 = vst.msk [vmem:[#allocation2 + $0xc0] sm:$0xff] %vm518, %v698
        %753 = vst.msk [vmem:[#allocation2 + $0xc8] sm:$0xff] %vm518, %v701
        %754 = vst.msk [vmem:[#allocation2 + $0xd0] sm:$0xff] %vm518, %v706
        %755 = vst.msk [vmem:[#allocation2 + $0xd8] sm:$0xff] %vm518, %v709
        %756 = vst.msk [vmem:[#allocation2 + $0xe0] sm:$0xff] %vm518, %v714
        %757 = vst.msk [vmem:[#allocation2 + $0xe8] sm:$0xff] %vm518, %v717
        %758 = vst.msk [vmem:[#allocation2 + $0xf0] sm:$0xff] %vm518, %v722
        %759 = vst.msk [vmem:[#allocation2 + $0xf8] sm:$0xff] %vm518, %v725
        %s760 = sadd.s32 %s242, 1
        %s761 = smul.u32 %s760, 4
        %s762 = smul.addr %s761, 4
        %s763 = scalar_lea.vmem %s202, %s762 [#allocation3]
        %v764 = vld [vmem:[%s763] sm:$0xff]
        %v765 = vld [vmem:[%s763 + $0x8] sm:$0xff]
        %v766 = vld [vmem:[%s763 + $0x10] sm:$0xff]
        %v767 = vld [vmem:[%s763 + $0x18] sm:$0xff]
        %v768 = vld [vmem:[%s763 + $0x20] sm:$0xff]
        %v769 = vld [vmem:[%s763 + $0x28] sm:$0xff]
        %v770 = vld [vmem:[%s763 + $0x30] sm:$0xff]
        %v771 = vld [vmem:[%s763 + $0x38] sm:$0xff]
        %v772 = vld [vmem:[%s763 + $0x40] sm:$0xff]
        %v773 = vld [vmem:[%s763 + $0x48] sm:$0xff]
        %v774 = vld [vmem:[%s763 + $0x50] sm:$0xff]
        %v775 = vld [vmem:[%s763 + $0x58] sm:$0xff]
        %v776 = vld [vmem:[%s763 + $0x60] sm:$0xff]
        %v777 = vld [vmem:[%s763 + $0x68] sm:$0xff]
        %v778 = vld [vmem:[%s763 + $0x70] sm:$0xff]
        %v779 = vld [vmem:[%s763 + $0x78] sm:$0xff]
        %v780 = vld [vmem:[%s763 + $0x80] sm:$0xff]
        %v781 = vld [vmem:[%s763 + $0x88] sm:$0xff]
        %v782 = vld [vmem:[%s763 + $0x90] sm:$0xff]
        %v783 = vld [vmem:[%s763 + $0x98] sm:$0xff]
        %v784 = vld [vmem:[%s763 + $0xa0] sm:$0xff]
        %v785 = vld [vmem:[%s763 + $0xa8] sm:$0xff]
        %v786 = vld [vmem:[%s763 + $0xb0] sm:$0xff]
        %v787 = vld [vmem:[%s763 + $0xb8] sm:$0xff]
        %v788 = vld [vmem:[%s763 + $0xc0] sm:$0xff]
        %v789 = vld [vmem:[%s763 + $0xc8] sm:$0xff]
        %v790 = vld [vmem:[%s763 + $0xd0] sm:$0xff]
        %v791 = vld [vmem:[%s763 + $0xd8] sm:$0xff]
        %v792 = vld [vmem:[%s763 + $0xe0] sm:$0xff]
        %v793 = vld [vmem:[%s763 + $0xe8] sm:$0xff]
        %v794 = vld [vmem:[%s763 + $0xf0] sm:$0xff]
        %v795 = vld [vmem:[%s763 + $0xf8] sm:$0xff]
        %s796 = scalar_lea.vmem %s1, 96
        %v797 = vld [vmem:[%s796] sm:$0xf]
        %v798 = vld [vmem:[%s796 + $0x4] sm:$0xf]
        %v799 = vld [vmem:[%s796 + $0x8] sm:$0xf]
        %v800 = vld [vmem:[%s796 + $0xc] sm:$0xf]
        %v801 = vld [vmem:[%s796 + $0x10] sm:$0xf]
        %v802 = vld [vmem:[%s796 + $0x14] sm:$0xf]
        %v803 = vld [vmem:[%s796 + $0x18] sm:$0xf]
        %v804 = vld [vmem:[%s796 + $0x1c] sm:$0xf]
        %v805 = vld [vmem:[%s796 + $0x20] sm:$0xf]
        %v806 = vld [vmem:[%s796 + $0x24] sm:$0xf]
        %v807 = vld [vmem:[%s796 + $0x28] sm:$0xf]
        %v808 = vld [vmem:[%s796 + $0x2c] sm:$0xf]
        %v809 = vld [vmem:[%s796 + $0x30] sm:$0xf]
        %v810 = vld [vmem:[%s796 + $0x34] sm:$0xf]
        %v811 = vld [vmem:[%s796 + $0x38] sm:$0xf]
        %v812 = vld [vmem:[%s796 + $0x3c] sm:$0xf]
        %v813 = vld [vmem:[%s796 + $0x40] sm:$0xf]
        %v814 = vld [vmem:[%s796 + $0x44] sm:$0xf]
        %v815 = vld [vmem:[%s796 + $0x48] sm:$0xf]
        %v816 = vld [vmem:[%s796 + $0x4c] sm:$0xf]
        %v817 = vld [vmem:[%s796 + $0x50] sm:$0xf]
        %v818 = vld [vmem:[%s796 + $0x54] sm:$0xf]
        %v819 = vld [vmem:[%s796 + $0x58] sm:$0xf]
        %v820 = vld [vmem:[%s796 + $0x5c] sm:$0xf]
        %v853 = vunpack.c.l.b16 %v764
        %v854 = vunpack.c.h.b16 %v764
        %v855 = vunpack.c.l.b16 %v765
        %v856 = vunpack.c.h.b16 %v765
        %v857 = vunpack.c.l.b16 %v766
        %v858 = vunpack.c.h.b16 %v766
        %v859 = vunpack.c.l.b16 %v767
        %v860 = vunpack.c.h.b16 %v767
        %v861 = vunpack.c.l.b16 %v768
        %v862 = vunpack.c.h.b16 %v768
        %v863 = vunpack.c.l.b16 %v769
        %v864 = vunpack.c.h.b16 %v769
        %v865 = vunpack.c.l.b16 %v770
        %v866 = vunpack.c.h.b16 %v770
        %v867 = vunpack.c.l.b16 %v771
        %v868 = vunpack.c.h.b16 %v771
        %v869 = vunpack.c.l.b16 %v772
        %v870 = vunpack.c.h.b16 %v772
        %v871 = vunpack.c.l.b16 %v773
        %v872 = vunpack.c.h.b16 %v773
        %v873 = vunpack.c.l.b16 %v774
        %v874 = vunpack.c.h.b16 %v774
        %v875 = vunpack.c.l.b16 %v775
        %v876 = vunpack.c.h.b16 %v775
        %v877 = vunpack.c.l.b16 %v776
        %v878 = vunpack.c.h.b16 %v776
        %v879 = vunpack.c.l.b16 %v777
        %v880 = vunpack.c.h.b16 %v777
        %v881 = vunpack.c.l.b16 %v778
        %v882 = vunpack.c.h.b16 %v778
        %v883 = vunpack.c.l.b16 %v779
        %v884 = vunpack.c.h.b16 %v779
        %v885 = vunpack.c.l.b16 %v780
        %v886 = vunpack.c.h.b16 %v780
        %v887 = vunpack.c.l.b16 %v781
        %v888 = vunpack.c.h.b16 %v781
        %v889 = vunpack.c.l.b16 %v782
        %v890 = vunpack.c.h.b16 %v782
        %v891 = vunpack.c.l.b16 %v783
        %v892 = vunpack.c.h.b16 %v783
        %v893 = vunpack.c.l.b16 %v784
        %v894 = vunpack.c.h.b16 %v784
        %v895 = vunpack.c.l.b16 %v785
        %v896 = vunpack.c.h.b16 %v785
        %v897 = vunpack.c.l.b16 %v786
        %v898 = vunpack.c.h.b16 %v786
        %v899 = vunpack.c.l.b16 %v787
        %v900 = vunpack.c.h.b16 %v787
        %v901 = vunpack.c.l.b16 %v788
        %v902 = vunpack.c.h.b16 %v788
        %v903 = vunpack.c.l.b16 %v789
        %v904 = vunpack.c.h.b16 %v789
        %v905 = vunpack.c.l.b16 %v790
        %v906 = vunpack.c.h.b16 %v790
        %v907 = vunpack.c.l.b16 %v791
        %v908 = vunpack.c.h.b16 %v791
        %v909 = vunpack.c.l.b16 %v792
        %v910 = vunpack.c.h.b16 %v792
        %v911 = vunpack.c.l.b16 %v793
        %v912 = vunpack.c.h.b16 %v793
        %v913 = vunpack.c.l.b16 %v794
        %v914 = vunpack.c.h.b16 %v794
        %v915 = vunpack.c.l.b16 %v795
        %v916 = vunpack.c.h.b16 %v795
        %v917 = vpack.c.b16 %v855, %v853
        %v918 = vpack.c.b16 %v856, %v854
        %v919 = vpack.c.b16 %v859, %v857
        %v920 = vpack.c.b16 %v860, %v858
        %v921 = vpack.c.b16 %v863, %v861
        %v922 = vpack.c.b16 %v864, %v862
        %v923 = vpack.c.b16 %v867, %v865
        %v924 = vpack.c.b16 %v868, %v866
        %v925 = vpack.c.b16 %v871, %v869
        %v926 = vpack.c.b16 %v872, %v870
        %v927 = vpack.c.b16 %v875, %v873
        %v928 = vpack.c.b16 %v876, %v874
        %v929 = vpack.c.b16 %v879, %v877
        %v930 = vpack.c.b16 %v880, %v878
        %v931 = vpack.c.b16 %v883, %v881
        %v932 = vpack.c.b16 %v884, %v882
        %v933 = vpack.c.b16 %v887, %v885
        %v934 = vpack.c.b16 %v888, %v886
        %v935 = vpack.c.b16 %v891, %v889
        %v936 = vpack.c.b16 %v892, %v890
        %v937 = vpack.c.b16 %v895, %v893
        %v938 = vpack.c.b16 %v896, %v894
        %v939 = vpack.c.b16 %v899, %v897
        %v940 = vpack.c.b16 %v900, %v898
        %v941 = vpack.c.b16 %v903, %v901
        %v942 = vpack.c.b16 %v904, %v902
        %v943 = vpack.c.b16 %v907, %v905
        %v944 = vpack.c.b16 %v908, %v906
        %v945 = vpack.c.b16 %v911, %v909
        %v946 = vpack.c.b16 %v912, %v910
        %v947 = vpack.c.b16 %v915, %v913
        %v948 = vpack.c.b16 %v916, %v914
        %v989 = vunpack.c.l.b16 %v797
        %v990 = vunpack.c.l.b16 %v798
        %v991 = vunpack.c.l.b16 %v799
        %v992 = vunpack.c.l.b16 %v800
        %v993 = vunpack.c.l.b16 %v801
        %v994 = vunpack.c.l.b16 %v802
        %v995 = vunpack.c.l.b16 %v803
        %v996 = vunpack.c.l.b16 %v804
        %v997 = vunpack.c.l.b16 %v805
        %v998 = vunpack.c.l.b16 %v806
        %v999 = vunpack.c.l.b16 %v807
        %v1000 = vunpack.c.l.b16 %v808
        %v1001 = vunpack.c.l.b16 %v809
        %v1002 = vunpack.c.l.b16 %v810
        %v1003 = vunpack.c.l.b16 %v811
        %v1004 = vunpack.c.l.b16 %v812
        %v1005 = vunpack.c.l.b16 %v813
        %v1006 = vunpack.c.l.b16 %v814
        %v1007 = vunpack.c.l.b16 %v815
        %v1008 = vunpack.c.l.b16 %v816
        %v1009 = vunpack.c.l.b16 %v817
        %v1010 = vunpack.c.l.b16 %v818
        %v1011 = vunpack.c.l.b16 %v819
        %v1012 = vunpack.c.l.b16 %v820
        %v1013 = vpack.c.b16 %v990, %v989
        %v1014 = vpack.c.b16 %v992, %v991
        %v1015 = vpack.c.b16 %v994, %v993
        %v1016 = vpack.c.b16 %v996, %v995
        %v1017 = vpack.c.b16 %v998, %v997
        %v1018 = vpack.c.b16 %v1000, %v999
        %v1019 = vpack.c.b16 %v1002, %v1001
        %v1020 = vpack.c.b16 %v1004, %v1003
        %v1021 = vpack.c.b16 %v1006, %v1005
        %v1022 = vpack.c.b16 %v1008, %v1007
        %v1023 = vpack.c.b16 %v1010, %v1009
        %v1024 = vpack.c.b16 %v1012, %v1011
        %v1038 = vsel %vm518, %v918, 0
        %v1041 = vsel %vm518, %v920, 0
        %v1044 = vsel %vm518, %v922, 0
        %v1047 = vsel %vm518, %v924, 0
        %v1050 = vsel %vm518, %v926, 0
        %v1053 = vsel %vm518, %v928, 0
        %v1056 = vsel %vm518, %v930, 0
        %v1059 = vsel %vm518, %v932, 0
        %v1062 = vsel %vm518, %v934, 0
        %v1065 = vsel %vm518, %v936, 0
        %v1068 = vsel %vm518, %v938, 0
        %v1071 = vsel %vm518, %v940, 0
        %v1074 = vsel %vm518, %v942, 0
        %v1077 = vsel %vm518, %v944, 0
        %v1080 = vsel %vm518, %v946, 0
        %v1083 = vsel %vm518, %v948, 0
        %1085 = vmatprep.subr.bf16.mxu0 0
        %1086 = vmatpush1.bf16.msra.mxu0 %v1013
        %1087 = vmatprep.subr.bf16.mxu0 0
        %1088 = vmatpush1.bf16.msra.mxu0 %v1014
        %1089 = vmatprep.subr.bf16.mxu0 0
        %1090 = vmatpush1.bf16.msra.mxu0 %v1015
        %1091 = vmatprep.subr.bf16.mxu0 0
        %1092 = vmatpush1.bf16.msra.mxu0 %v1016
        %1093 = vmatprep.subr.bf16.mxu0 0
        %1094 = vmatpush1.bf16.msra.mxu0 %v1017
        %1095 = vmatprep.subr.bf16.mxu0 0
        %1096 = vmatpush1.bf16.msra.mxu0 %v1018
        %1097 = vmatprep.subr.bf16.mxu0 0
        %1098 = vmatpush1.bf16.msra.mxu0 %v1019
        %1099 = vmatprep.subr.bf16.mxu0 0
        %1100 = vmatpush1.bf16.msra.mxu0 %v1020
        %1101 = vmatprep.subr.bf16.mxu0 0
        %1102 = vmatpush1.bf16.msra.mxu0 %v1021
        %1103 = vmatprep.subr.bf16.mxu0 0
        %1104 = vmatpush1.bf16.msra.mxu0 %v1022
        %1105 = vmatprep.subr.bf16.mxu0 0
        %1106 = vmatpush1.bf16.msra.mxu0 %v1023
        %1107 = vmatprep.subr.bf16.mxu0 0
        %1108 = vmatpush1.bf16.msra.mxu0 %v1024
        %1109 = vmatprep.subr.bf16.mxu0 0
        %1110 = vmatpush1.bf16.msra.mxu0 0
        %1111 = vmatprep.subr.bf16.mxu0 0
        %1112 = vmatpush1.bf16.msra.mxu0 0
        %1113 = vmatprep.subr.bf16.mxu0 0
        %1114 = vmatpush1.bf16.msra.mxu0 0
        %1115 = vmatprep.subr.bf16.mxu0 0
        %1116 = vmatpush1.bf16.msra.mxu0 0
        %1117 = vmatprep.mubr.bf16.mxu0 %v1038
        %1118 = vmatmul.mubr.bf16.gmra.mrb[0].mxu0 %v917
        %v1119 = vpop.f32.mrb[0].mxu0
        %v1120 = vadd.f32 0.0, %v1119
        %v1121 = vpop.f32.mrb[0].mxu0
        %v1122 = vpop.f32.mrb[0].mxu0
        %v1123 = vadd.f32 0.0, %v1122
        %v1124 = vpop.f32.mrb[0].mxu0
        %1125 = vmatprep.mubr.bf16.mxu0 %v1041
        %1126 = vmatmul.mubr.bf16.gmra.mrb[0].mxu0 %v919
        %v1127 = vpop.f32.mrb[0].mxu0
        %v1128 = vadd.f32 0.0, %v1127
        %v1129 = vpop.f32.mrb[0].mxu0
        %v1130 = vpop.f32.mrb[0].mxu0
        %v1131 = vadd.f32 0.0, %v1130
        %v1132 = vpop.f32.mrb[0].mxu0
        %1133 = vmatprep.mubr.bf16.mxu0 %v1044
        %1134 = vmatmul.mubr.bf16.gmra.mrb[0].mxu0 %v921
        %v1135 = vpop.f32.mrb[0].mxu0
        %v1136 = vadd.f32 0.0, %v1135
        %v1137 = vpop.f32.mrb[0].mxu0
        %v1138 = vpop.f32.mrb[0].mxu0
        %v1139 = vadd.f32 0.0, %v1138
        %v1140 = vpop.f32.mrb[0].mxu0
        %1141 = vmatprep.mubr.bf16.mxu0 %v1047
        %1142 = vmatmul.mubr.bf16.gmra.mrb[0].mxu0 %v923
        %v1143 = vpop.f32.mrb[0].mxu0
        %v1144 = vadd.f32 0.0, %v1143
        %v1145 = vpop.f32.mrb[0].mxu0
        %v1146 = vpop.f32.mrb[0].mxu0
        %v1147 = vadd.f32 0.0, %v1146
        %v1148 = vpop.f32.mrb[0].mxu0
        %1149 = vmatprep.mubr.bf16.mxu0 %v1050
        %1150 = vmatmul.mubr.bf16.gmra.mrb[0].mxu0 %v925
        %v1151 = vpop.f32.mrb[0].mxu0
        %v1152 = vadd.f32 0.0, %v1151
        %v1153 = vpop.f32.mrb[0].mxu0
        %v1154 = vpop.f32.mrb[0].mxu0
        %v1155 = vadd.f32 0.0, %v1154
        %v1156 = vpop.f32.mrb[0].mxu0
        %1157 = vmatprep.mubr.bf16.mxu0 %v1053
        %1158 = vmatmul.mubr.bf16.gmra.mrb[0].mxu0 %v927
        %v1159 = vpop.f32.mrb[0].mxu0
        %v1160 = vadd.f32 0.0, %v1159
        %v1161 = vpop.f32.mrb[0].mxu0
        %v1162 = vpop.f32.mrb[0].mxu0
        %v1163 = vadd.f32 0.0, %v1162
        %v1164 = vpop.f32.mrb[0].mxu0
        %1165 = vmatprep.mubr.bf16.mxu0 %v1056
        %1166 = vmatmul.mubr.bf16.gmra.mrb[0].mxu0 %v929
        %v1167 = vpop.f32.mrb[0].mxu0
        %v1168 = vadd.f32 0.0, %v1167
        %v1169 = vpop.f32.mrb[0].mxu0
        %v1170 = vpop.f32.mrb[0].mxu0
        %v1171 = vadd.f32 0.0, %v1170
        %v1172 = vpop.f32.mrb[0].mxu0
        %1173 = vmatprep.mubr.bf16.mxu0 %v1059
        %1174 = vmatmul.mubr.bf16.gmra.mrb[0].mxu0 %v931
        %v1175 = vpop.f32.mrb[0].mxu0
        %v1176 = vadd.f32 0.0, %v1175
        %v1177 = vpop.f32.mrb[0].mxu0
        %v1178 = vpop.f32.mrb[0].mxu0
        %v1179 = vadd.f32 0.0, %v1178
        %v1180 = vpop.f32.mrb[0].mxu0
        %1181 = vmatprep.mubr.bf16.mxu0 %v1062
        %1182 = vmatmul.mubr.bf16.gmra.mrb[0].mxu0 %v933
        %v1183 = vpop.f32.mrb[0].mxu0
        %v1184 = vadd.f32 0.0, %v1183
        %v1185 = vpop.f32.mrb[0].mxu0
        %v1186 = vpop.f32.mrb[0].mxu0
        %v1187 = vadd.f32 0.0, %v1186
        %v1188 = vpop.f32.mrb[0].mxu0
        %1189 = vmatprep.mubr.bf16.mxu0 %v1065
        %1190 = vmatmul.mubr.bf16.gmra.mrb[0].mxu0 %v935
        %v1191 = vpop.f32.mrb[0].mxu0
        %v1192 = vadd.f32 0.0, %v1191
        %v1193 = vpop.f32.mrb[0].mxu0
        %v1194 = vpop.f32.mrb[0].mxu0
        %v1195 = vadd.f32 0.0, %v1194
        %v1196 = vpop.f32.mrb[0].mxu0
        %1197 = vmatprep.mubr.bf16.mxu0 %v1068
        %1198 = vmatmul.mubr.bf16.gmra.mrb[0].mxu0 %v937
        %v1199 = vpop.f32.mrb[0].mxu0
        %v1200 = vadd.f32 0.0, %v1199
        %v1201 = vpop.f32.mrb[0].mxu0
        %v1202 = vpop.f32.mrb[0].mxu0
        %v1203 = vadd.f32 0.0, %v1202
        %v1204 = vpop.f32.mrb[0].mxu0
        %1205 = vmatprep.mubr.bf16.mxu0 %v1071
        %1206 = vmatmul.mubr.bf16.gmra.mrb[0].mxu0 %v939
        %v1207 = vpop.f32.mrb[0].mxu0
        %v1208 = vadd.f32 0.0, %v1207
        %v1209 = vpop.f32.mrb[0].mxu0
        %v1210 = vpop.f32.mrb[0].mxu0
        %v1211 = vadd.f32 0.0, %v1210
        %v1212 = vpop.f32.mrb[0].mxu0
        %1213 = vmatprep.mubr.bf16.mxu0 %v1074
        %1214 = vmatmul.mubr.bf16.gmra.mrb[0].mxu0 %v941
        %v1215 = vpop.f32.mrb[0].mxu0
        %v1216 = vadd.f32 0.0, %v1215
        %v1217 = vpop.f32.mrb[0].mxu0
        %v1218 = vpop.f32.mrb[0].mxu0
        %v1219 = vadd.f32 0.0, %v1218
        %v1220 = vpop.f32.mrb[0].mxu0
        %1221 = vmatprep.mubr.bf16.mxu0 %v1077
        %1222 = vmatmul.mubr.bf16.gmra.mrb[0].mxu0 %v943
        %v1223 = vpop.f32.mrb[0].mxu0
        %v1224 = vadd.f32 0.0, %v1223
        %v1225 = vpop.f32.mrb[0].mxu0
        %v1226 = vpop.f32.mrb[0].mxu0
        %v1227 = vadd.f32 0.0, %v1226
        %v1228 = vpop.f32.mrb[0].mxu0
        %1229 = vmatprep.mubr.bf16.mxu0 %v1080
        %1230 = vmatmul.mubr.bf16.gmra.mrb[0].mxu0 %v945
        %v1231 = vpop.f32.mrb[0].mxu0
        %v1232 = vadd.f32 0.0, %v1231
        %v1233 = vpop.f32.mrb[0].mxu0
        %v1234 = vpop.f32.mrb[0].mxu0
        %v1235 = vadd.f32 0.0, %v1234
        %v1236 = vpop.f32.mrb[0].mxu0
        %1237 = vmatprep.mubr.bf16.mxu0 %v1083
        %1238 = vmatmul.mubr.bf16.gmra.mrb[0].mxu0 %v947
        %v1239 = vpop.f32.mrb[0].mxu0
        %v1240 = vadd.f32 0.0, %v1239
        %v1241 = vpop.f32.mrb[0].mxu0
        %v1242 = vpop.f32.mrb[0].mxu0
        %v1243 = vadd.f32 0.0, %v1242
        %v1244 = vpop.f32.mrb[0].mxu0
        %1245 = vdwg.mxu0
        %v1246 = vld [vmem:[#allocation2] sm:$0xff]
        %v1247 = vld [vmem:[#allocation2 + $0x8] sm:$0xff]
        %v1248 = vld [vmem:[#allocation2 + $0x10] sm:$0xff]
        %v1249 = vld [vmem:[#allocation2 + $0x18] sm:$0xff]
        %v1250 = vld [vmem:[#allocation2 + $0x20] sm:$0xff]
        %v1251 = vld [vmem:[#allocation2 + $0x28] sm:$0xff]
        %v1252 = vld [vmem:[#allocation2 + $0x30] sm:$0xff]
        %v1253 = vld [vmem:[#allocation2 + $0x38] sm:$0xff]
        %v1254 = vld [vmem:[#allocation2 + $0x40] sm:$0xff]
        %v1255 = vld [vmem:[#allocation2 + $0x48] sm:$0xff]
        %v1256 = vld [vmem:[#allocation2 + $0x50] sm:$0xff]
        %v1257 = vld [vmem:[#allocation2 + $0x58] sm:$0xff]
        %v1258 = vld [vmem:[#allocation2 + $0x60] sm:$0xff]
        %v1259 = vld [vmem:[#allocation2 + $0x68] sm:$0xff]
        %v1260 = vld [vmem:[#allocation2 + $0x70] sm:$0xff]
        %v1261 = vld [vmem:[#allocation2 + $0x78] sm:$0xff]
        %v1262 = vld [vmem:[#allocation2 + $0x80] sm:$0xff]
        %v1263 = vld [vmem:[#allocation2 + $0x88] sm:$0xff]
        %v1264 = vld [vmem:[#allocation2 + $0x90] sm:$0xff]
        %v1265 = vld [vmem:[#allocation2 + $0x98] sm:$0xff]
        %v1266 = vld [vmem:[#allocation2 + $0xa0] sm:$0xff]
        %v1267 = vld [vmem:[#allocation2 + $0xa8] sm:$0xff]
        %v1268 = vld [vmem:[#allocation2 + $0xb0] sm:$0xff]
        %v1269 = vld [vmem:[#allocation2 + $0xb8] sm:$0xff]
        %v1270 = vld [vmem:[#allocation2 + $0xc0] sm:$0xff]
        %v1271 = vld [vmem:[#allocation2 + $0xc8] sm:$0xff]
        %v1272 = vld [vmem:[#allocation2 + $0xd0] sm:$0xff]
        %v1273 = vld [vmem:[#allocation2 + $0xd8] sm:$0xff]
        %v1274 = vld [vmem:[#allocation2 + $0xe0] sm:$0xff]
        %v1275 = vld [vmem:[#allocation2 + $0xe8] sm:$0xff]
        %v1276 = vld [vmem:[#allocation2 + $0xf0] sm:$0xff]
        %v1277 = vld [vmem:[#allocation2 + $0xf8] sm:$0xff]
        %v1278 = vadd.f32 %v1246, %v1120
        %v1279 = vadd.f32 %v1247, %v1123
        %v1280 = vadd.f32 %v1248, %v1128
        %v1281 = vadd.f32 %v1249, %v1131
        %v1282 = vadd.f32 %v1250, %v1136
        %v1283 = vadd.f32 %v1251, %v1139
        %v1284 = vadd.f32 %v1252, %v1144
        %v1285 = vadd.f32 %v1253, %v1147
        %v1286 = vadd.f32 %v1254, %v1152
        %v1287 = vadd.f32 %v1255, %v1155
        %v1288 = vadd.f32 %v1256, %v1160
        %v1289 = vadd.f32 %v1257, %v1163
        %v1290 = vadd.f32 %v1258, %v1168
        %v1291 = vadd.f32 %v1259, %v1171
        %v1292 = vadd.f32 %v1260, %v1176
        %v1293 = vadd.f32 %v1261, %v1179
        %v1294 = vadd.f32 %v1262, %v1184
        %v1295 = vadd.f32 %v1263, %v1187
        %v1296 = vadd.f32 %v1264, %v1192
        %v1297 = vadd.f32 %v1265, %v1195
        %v1298 = vadd.f32 %v1266, %v1200
        %v1299 = vadd.f32 %v1267, %v1203
        %v1300 = vadd.f32 %v1268, %v1208
        %v1301 = vadd.f32 %v1269, %v1211
        %v1302 = vadd.f32 %v1270, %v1216
        %v1303 = vadd.f32 %v1271, %v1219
        %v1304 = vadd.f32 %v1272, %v1224
        %v1305 = vadd.f32 %v1273, %v1227
        %v1306 = vadd.f32 %v1274, %v1232
        %v1307 = vadd.f32 %v1275, %v1235
        %v1308 = vadd.f32 %v1276, %v1240
        %v1309 = vadd.f32 %v1277, %v1243
        %1310 = vst.msk [vmem:[#allocation2] sm:$0xff] %vm518, %v1278
        %1311 = vst.msk [vmem:[#allocation2 + $0x8] sm:$0xff] %vm518, %v1279
        %1312 = vst.msk [vmem:[#allocation2 + $0x10] sm:$0xff] %vm518, %v1280
        %1313 = vst.msk [vmem:[#allocation2 + $0x18] sm:$0xff] %vm518, %v1281
        %1314 = vst.msk [vmem:[#allocation2 + $0x20] sm:$0xff] %vm518, %v1282
        %1315 = vst.msk [vmem:[#allocation2 + $0x28] sm:$0xff] %vm518, %v1283
        %1316 = vst.msk [vmem:[#allocation2 + $0x30] sm:$0xff] %vm518, %v1284
        %1317 = vst.msk [vmem:[#allocation2 + $0x38] sm:$0xff] %vm518, %v1285
        %1318 = vst.msk [vmem:[#allocation2 + $0x40] sm:$0xff] %vm518, %v1286
        %1319 = vst.msk [vmem:[#allocation2 + $0x48] sm:$0xff] %vm518, %v1287
        %1320 = vst.msk [vmem:[#allocation2 + $0x50] sm:$0xff] %vm518, %v1288
        %1321 = vst.msk [vmem:[#allocation2 + $0x58] sm:$0xff] %vm518, %v1289
        %1322 = vst.msk [vmem:[#allocation2 + $0x60] sm:$0xff] %vm518, %v1290
        %1323 = vst.msk [vmem:[#allocation2 + $0x68] sm:$0xff] %vm518, %v1291
        %1324 = vst.msk [vmem:[#allocation2 + $0x70] sm:$0xff] %vm518, %v1292
        %1325 = vst.msk [vmem:[#allocation2 + $0x78] sm:$0xff] %vm518, %v1293
        %1326 = vst.msk [vmem:[#allocation2 + $0x80] sm:$0xff] %vm518, %v1294
        %1327 = vst.msk [vmem:[#allocation2 + $0x88] sm:$0xff] %vm518, %v1295
        %1328 = vst.msk [vmem:[#allocation2 + $0x90] sm:$0xff] %vm518, %v1296
        %1329 = vst.msk [vmem:[#allocation2 + $0x98] sm:$0xff] %vm518, %v1297
        %1330 = vst.msk [vmem:[#allocation2 + $0xa0] sm:$0xff] %vm518, %v1298
        %1331 = vst.msk [vmem:[#allocation2 + $0xa8] sm:$0xff] %vm518, %v1299
        %1332 = vst.msk [vmem:[#allocation2 + $0xb0] sm:$0xff] %vm518, %v1300
        %1333 = vst.msk [vmem:[#allocation2 + $0xb8] sm:$0xff] %vm518, %v1301
        %1334 = vst.msk [vmem:[#allocation2 + $0xc0] sm:$0xff] %vm518, %v1302
        %1335 = vst.msk [vmem:[#allocation2 + $0xc8] sm:$0xff] %vm518, %v1303
        %1336 = vst.msk [vmem:[#allocation2 + $0xd0] sm:$0xff] %vm518, %v1304
        %1337 = vst.msk [vmem:[#allocation2 + $0xd8] sm:$0xff] %vm518, %v1305
        %1338 = vst.msk [vmem:[#allocation2 + $0xe0] sm:$0xff] %vm518, %v1306
        %1339 = vst.msk [vmem:[#allocation2 + $0xe8] sm:$0xff] %vm518, %v1307
        %1340 = vst.msk [vmem:[#allocation2 + $0xf0] sm:$0xff] %vm518, %v1308
        %1341 = vst.msk [vmem:[#allocation2 + $0xf8] sm:$0xff] %vm518, %v1309
        %s1342 = sadd.s32 %s242, 2
        %s1343 = smul.u32 %s1342, 4
        %s1344 = smul.addr %s1343, 4
        %s1345 = scalar_lea.vmem %s202, %s1344 [#allocation3]
        %v1346 = vld [vmem:[%s1345] sm:$0xff]
        %v1347 = vld [vmem:[%s1345 + $0x8] sm:$0xff]
        %v1348 = vld [vmem:[%s1345 + $0x10] sm:$0xff]
        %v1349 = vld [vmem:[%s1345 + $0x18] sm:$0xff]
        %v1350 = vld [vmem:[%s1345 + $0x20] sm:$0xff]
        %v1351 = vld [vmem:[%s1345 + $0x28] sm:$0xff]
        %v1352 = vld [vmem:[%s1345 + $0x30] sm:$0xff]
        %v1353 = vld [vmem:[%s1345 + $0x38] sm:$0xff]
        %v1354 = vld [vmem:[%s1345 + $0x40] sm:$0xff]
        %v1355 = vld [vmem:[%s1345 + $0x48] sm:$0xff]
        %v1356 = vld [vmem:[%s1345 + $0x50] sm:$0xff]
        %v1357 = vld [vmem:[%s1345 + $0x58] sm:$0xff]
        %v1358 = vld [vmem:[%s1345 + $0x60] sm:$0xff]
        %v1359 = vld [vmem:[%s1345 + $0x68] sm:$0xff]
        %v1360 = vld [vmem:[%s1345 + $0x70] sm:$0xff]
        %v1361 = vld [vmem:[%s1345 + $0x78] sm:$0xff]
        %v1362 = vld [vmem:[%s1345 + $0x80] sm:$0xff]
        %v1363 = vld [vmem:[%s1345 + $0x88] sm:$0xff]
        %v1364 = vld [vmem:[%s1345 + $0x90] sm:$0xff]
        %v1365 = vld [vmem:[%s1345 + $0x98] sm:$0xff]
        %v1366 = vld [vmem:[%s1345 + $0xa0] sm:$0xff]
        %v1367 = vld [vmem:[%s1345 + $0xa8] sm:$0xff]
        %v1368 = vld [vmem:[%s1345 + $0xb0] sm:$0xff]
        %v1369 = vld [vmem:[%s1345 + $0xb8] sm:$0xff]
        %v1370 = vld [vmem:[%s1345 + $0xc0] sm:$0xff]
        %v1371 = vld [vmem:[%s1345 + $0xc8] sm:$0xff]
        %v1372 = vld [vmem:[%s1345 + $0xd0] sm:$0xff]
        %v1373 = vld [vmem:[%s1345 + $0xd8] sm:$0xff]
        %v1374 = vld [vmem:[%s1345 + $0xe0] sm:$0xff]
        %v1375 = vld [vmem:[%s1345 + $0xe8] sm:$0xff]
        %v1376 = vld [vmem:[%s1345 + $0xf0] sm:$0xff]
        %v1377 = vld [vmem:[%s1345 + $0xf8] sm:$0xff]
        %s1378 = scalar_lea.vmem %s1, 192
        %v1379 = vld [vmem:[%s1378] sm:$0xf]
        %v1380 = vld [vmem:[%s1378 + $0x4] sm:$0xf]
        %v1381 = vld [vmem:[%s1378 + $0x8] sm:$0xf]
        %v1382 = vld [vmem:[%s1378 + $0xc] sm:$0xf]
        %v1383 = vld [vmem:[%s1378 + $0x10] sm:$0xf]
        %v1384 = vld [vmem:[%s1378 + $0x14] sm:$0xf]
        %v1385 = vld [vmem:[%s1378 + $0x18] sm:$0xf]
        %v1386 = vld [vmem:[%s1378 + $0x1c] sm:$0xf]
        %v1387 = vld [vmem:[%s1378 + $0x20] sm:$0xf]
        %v1388 = vld [vmem:[%s1378 + $0x24] sm:$0xf]
        %v1389 = vld [vmem:[%s1378 + $0x28] sm:$0xf]
        %v1390 = vld [vmem:[%s1378 + $0x2c] sm:$0xf]
        %v1391 = vld [vmem:[%s1378 + $0x30] sm:$0xf]
        %v1392 = vld [vmem:[%s1378 + $0x34] sm:$0xf]
        %v1393 = vld [vmem:[%s1378 + $0x38] sm:$0xf]
        %v1394 = vld [vmem:[%s1378 + $0x3c] sm:$0xf]
        %v1395 = vld [vmem:[%s1378 + $0x40] sm:$0xf]
        %v1396 = vld [vmem:[%s1378 + $0x44] sm:$0xf]
        %v1397 = vld [vmem:[%s1378 + $0x48] sm:$0xf]
        %v1398 = vld [vmem:[%s1378 + $0x4c] sm:$0xf]
        %v1399 = vld [vmem:[%s1378 + $0x50] sm:$0xf]
        %v1400 = vld [vmem:[%s1378 + $0x54] sm:$0xf]
        %v1401 = vld [vmem:[%s1378 + $0x58] sm:$0xf]
        %v1402 = vld [vmem:[%s1378 + $0x5c] sm:$0xf]
        %v1435 = vunpack.c.l.b16 %v1346
        %v1436 = vunpack.c.h.b16 %v1346
        %v1437 = vunpack.c.l.b16 %v1347
        %v1438 = vunpack.c.h.b16 %v1347
        %v1439 = vunpack.c.l.b16 %v1348
        %v1440 = vunpack.c.h.b16 %v1348
        %v1441 = vunpack.c.l.b16 %v1349
        %v1442 = vunpack.c.h.b16 %v1349
        %v1443 = vunpack.c.l.b16 %v1350
        %v1444 = vunpack.c.h.b16 %v1350
        %v1445 = vunpack.c.l.b16 %v1351
        %v1446 = vunpack.c.h.b16 %v1351
        %v1447 = vunpack.c.l.b16 %v1352
        %v1448 = vunpack.c.h.b16 %v1352
        %v1449 = vunpack.c.l.b16 %v1353
        %v1450 = vunpack.c.h.b16 %v1353
        %v1451 = vunpack.c.l.b16 %v1354
        %v1452 = vunpack.c.h.b16 %v1354
        %v1453 = vunpack.c.l.b16 %v1355
        %v1454 = vunpack.c.h.b16 %v1355
        %v1455 = vunpack.c.l.b16 %v1356
        %v1456 = vunpack.c.h.b16 %v1356
        %v1457 = vunpack.c.l.b16 %v1357
        %v1458 = vunpack.c.h.b16 %v1357
        %v1459 = vunpack.c.l.b16 %v1358
        %v1460 = vunpack.c.h.b16 %v1358
        %v1461 = vunpack.c.l.b16 %v1359
        %v1462 = vunpack.c.h.b16 %v1359
        %v1463 = vunpack.c.l.b16 %v1360
        %v1464 = vunpack.c.h.b16 %v1360
        %v1465 = vunpack.c.l.b16 %v1361
        %v1466 = vunpack.c.h.b16 %v1361
        %v1467 = vunpack.c.l.b16 %v1362
        %v1468 = vunpack.c.h.b16 %v1362
        %v1469 = vunpack.c.l.b16 %v1363
        %v1470 = vunpack.c.h.b16 %v1363
        %v1471 = vunpack.c.l.b16 %v1364
        %v1472 = vunpack.c.h.b16 %v1364
        %v1473 = vunpack.c.l.b16 %v1365
        %v1474 = vunpack.c.h.b16 %v1365
        %v1475 = vunpack.c.l.b16 %v1366
        %v1476 = vunpack.c.h.b16 %v1366
        %v1477 = vunpack.c.l.b16 %v1367
        %v1478 = vunpack.c.h.b16 %v1367
        %v1479 = vunpack.c.l.b16 %v1368
        %v1480 = vunpack.c.h.b16 %v1368
        %v1481 = vunpack.c.l.b16 %v1369
        %v1482 = vunpack.c.h.b16 %v1369
        %v1483 = vunpack.c.l.b16 %v1370
        %v1484 = vunpack.c.h.b16 %v1370
        %v1485 = vunpack.c.l.b16 %v1371
        %v1486 = vunpack.c.h.b16 %v1371
        %v1487 = vunpack.c.l.b16 %v1372
        %v1488 = vunpack.c.h.b16 %v1372
        %v1489 = vunpack.c.l.b16 %v1373
        %v1490 = vunpack.c.h.b16 %v1373
        %v1491 = vunpack.c.l.b16 %v1374
        %v1492 = vunpack.c.h.b16 %v1374
        %v1493 = vunpack.c.l.b16 %v1375
        %v1494 = vunpack.c.h.b16 %v1375
        %v1495 = vunpack.c.l.b16 %v1376
        %v1496 = vunpack.c.h.b16 %v1376
        %v1497 = vunpack.c.l.b16 %v1377
        %v1498 = vunpack.c.h.b16 %v1377
        %v1499 = vpack.c.b16 %v1437, %v1435
        %v1500 = vpack.c.b16 %v1438, %v1436
        %v1501 = vpack.c.b16 %v1441, %v1439
        %v1502 = vpack.c.b16 %v1442, %v1440
        %v1503 = vpack.c.b16 %v1445, %v1443
        %v1504 = vpack.c.b16 %v1446, %v1444
        %v1505 = vpack.c.b16 %v1449, %v1447
        %v1506 = vpack.c.b16 %v1450, %v1448
        %v1507 = vpack.c.b16 %v1453, %v1451
        %v1508 = vpack.c.b16 %v1454, %v1452
        %v1509 = vpack.c.b16 %v1457, %v1455
        %v1510 = vpack.c.b16 %v1458, %v1456
        %v1511 = vpack.c.b16 %v1461, %v1459
        %v1512 = vpack.c.b16 %v1462, %v1460
        %v1513 = vpack.c.b16 %v1465, %v1463
        %v1514 = vpack.c.b16 %v1466, %v1464
        %v1515 = vpack.c.b16 %v1469, %v1467
        %v1516 = vpack.c.b16 %v1470, %v1468
        %v1517 = vpack.c.b16 %v1473, %v1471
        %v1518 = vpack.c.b16 %v1474, %v1472
        %v1519 = vpack.c.b16 %v1477, %v1475
        %v1520 = vpack.c.b16 %v1478, %v1476
        %v1521 = vpack.c.b16 %v1481, %v1479
        %v1522 = vpack.c.b16 %v1482, %v1480
        %v1523 = vpack.c.b16 %v1485, %v1483
        %v1524 = vpack.c.b16 %v1486, %v1484
        %v1525 = vpack.c.b16 %v1489, %v1487
        %v1526 = vpack.c.b16 %v1490, %v1488
        %v1527 = vpack.c.b16 %v1493, %v1491
        %v1528 = vpack.c.b16 %v1494, %v1492
        %v1529 = vpack.c.b16 %v1497, %v1495
        %v1530 = vpack.c.b16 %v1498, %v1496
        %v1571 = vunpack.c.l.b16 %v1379
        %v1572 = vunpack.c.l.b16 %v1380
        %v1573 = vunpack.c.l.b16 %v1381
        %v1574 = vunpack.c.l.b16 %v1382
        %v1575 = vunpack.c.l.b16 %v1383
        %v1576 = vunpack.c.l.b16 %v1384
        %v1577 = vunpack.c.l.b16 %v1385
        %v1578 = vunpack.c.l.b16 %v1386
        %v1579 = vunpack.c.l.b16 %v1387
        %v1580 = vunpack.c.l.b16 %v1388
        %v1581 = vunpack.c.l.b16 %v1389
        %v1582 = vunpack.c.l.b16 %v1390
        %v1583 = vunpack.c.l.b16 %v1391
        %v1584 = vunpack.c.l.b16 %v1392
        %v1585 = vunpack.c.l.b16 %v1393
        %v1586 = vunpack.c.l.b16 %v1394
        %v1587 = vunpack.c.l.b16 %v1395
        %v1588 = vunpack.c.l.b16 %v1396
        %v1589 = vunpack.c.l.b16 %v1397
        %v1590 = vunpack.c.l.b16 %v1398
        %v1591 = vunpack.c.l.b16 %v1399
        %v1592 = vunpack.c.l.b16 %v1400
        %v1593 = vunpack.c.l.b16 %v1401
        %v1594 = vunpack.c.l.b16 %v1402
        %v1595 = vpack.c.b16 %v1572, %v1571
        %v1596 = vpack.c.b16 %v1574, %v1573
        %v1597 = vpack.c.b16 %v1576, %v1575
        %v1598 = vpack.c.b16 %v1578, %v1577
        %v1599 = vpack.c.b16 %v1580, %v1579
        %v1600 = vpack.c.b16 %v1582, %v1581
        %v1601 = vpack.c.b16 %v1584, %v1583
        %v1602 = vpack.c.b16 %v1586, %v1585
        %v1603 = vpack.c.b16 %v1588, %v1587
        %v1604 = vpack.c.b16 %v1590, %v1589
        %v1605 = vpack.c.b16 %v1592, %v1591
        %v1606 = vpack.c.b16 %v1594, %v1593
        %v1620 = vsel %vm518, %v1500, 0
        %v1623 = vsel %vm518, %v1502, 0
        %v1626 = vsel %vm518, %v1504, 0
        %v1629 = vsel %vm518, %v1506, 0
        %v1632 = vsel %vm518, %v1508, 0
        %v1635 = vsel %vm518, %v1510, 0
        %v1638 = vsel %vm518, %v1512, 0
        %v1641 = vsel %vm518, %v1514, 0
        %v1644 = vsel %vm518, %v1516, 0
        %v1647 = vsel %vm518, %v1518, 0
        %v1650 = vsel %vm518, %v1520, 0
        %v1653 = vsel %vm518, %v1522, 0
        %v1656 = vsel %vm518, %v1524, 0
        %v1659 = vsel %vm518, %v1526, 0
        %v1662 = vsel %vm518, %v1528, 0
        %v1665 = vsel %vm518, %v1530, 0
        %1667 = vmatprep.subr.bf16.mxu0 0
        %1668 = vmatpush1.bf16.msra.mxu0 %v1595
        %1669 = vmatprep.subr.bf16.mxu0 0
        %1670 = vmatpush1.bf16.msra.mxu0 %v1596
        %1671 = vmatprep.subr.bf16.mxu0 0
        %1672 = vmatpush1.bf16.msra.mxu0 %v1597
        %1673 = vmatprep.subr.bf16.mxu0 0
        %1674 = vmatpush1.bf16.msra.mxu0 %v1598
        %1675 = vmatprep.subr.bf16.mxu0 0
        %1676 = vmatpush1.bf16.msra.mxu0 %v1599
        %1677 = vmatprep.subr.bf16.mxu0 0
        %1678 = vmatpush1.bf16.msra.mxu0 %v1600
        %1679 = vmatprep.subr.bf16.mxu0 0
        %1680 = vmatpush1.bf16.msra.mxu0 %v1601
        %1681 = vmatprep.subr.bf16.mxu0 0
        %1682 = vmatpush1.bf16.msra.mxu0 %v1602
        %1683 = vmatprep.subr.bf16.mxu0 0
        %1684 = vmatpush1.bf16.msra.mxu0 %v1603
        %1685 = vmatprep.subr.bf16.mxu0 0
        %1686 = vmatpush1.bf16.msra.mxu0 %v1604
        %1687 = vmatprep.subr.bf16.mxu0 0
        %1688 = vmatpush1.bf16.msra.mxu0 %v1605
        %1689 = vmatprep.subr.bf16.mxu0 0
        %1690 = vmatpush1.bf16.msra.mxu0 %v1606
        %1691 = vmatprep.subr.bf16.mxu0 0
        %1692 = vmatpush1.bf16.msra.mxu0 0
        %1693 = vmatprep.subr.bf16.mxu0 0
        %1694 = vmatpush1.bf16.msra.mxu0 0
        %1695 = vmatprep.subr.bf16.mxu0 0
        %1696 = vmatpush1.bf16.msra.mxu0 0
        %1697 = vmatprep.subr.bf16.mxu0 0
        %1698 = vmatpush1.bf16.msra.mxu0 0
        %1699 = vmatprep.mubr.bf16.mxu0 %v1620
        %1700 = vmatmul.mubr.bf16.gmra.mrb[0].mxu0 %v1499
        %v1701 = vpop.f32.mrb[0].mxu0
        %v1702 = vadd.f32 0.0, %v1701
        %v1703 = vpop.f32.mrb[0].mxu0
        %v1704 = vpop.f32.mrb[0].mxu0
        %v1705 = vadd.f32 0.0, %v1704
        %v1706 = vpop.f32.mrb[0].mxu0
        %1707 = vmatprep.mubr.bf16.mxu0 %v1623
        %1708 = vmatmul.mubr.bf16.gmra.mrb[0].mxu0 %v1501
        %v1709 = vpop.f32.mrb[0].mxu0
        %v1710 = vadd.f32 0.0, %v1709
        %v1711 = vpop.f32.mrb[0].mxu0
        %v1712 = vpop.f32.mrb[0].mxu0
        %v1713 = vadd.f32 0.0, %v1712
        %v1714 = vpop.f32.mrb[0].mxu0
        %1715 = vmatprep.mubr.bf16.mxu0 %v1626
        %1716 = vmatmul.mubr.bf16.gmra.mrb[0].mxu0 %v1503
        %v1717 = vpop.f32.mrb[0].mxu0
        %v1718 = vadd.f32 0.0, %v1717
        %v1719 = vpop.f32.mrb[0].mxu0
        %v1720 = vpop.f32.mrb[0].mxu0
        %v1721 = vadd.f32 0.0, %v1720
        %v1722 = vpop.f32.mrb[0].mxu0
        %1723 = vmatprep.mubr.bf16.mxu0 %v1629
        %1724 = vmatmul.mubr.bf16.gmra.mrb[0].mxu0 %v1505
        %v1725 = vpop.f32.mrb[0].mxu0
        %v1726 = vadd.f32 0.0, %v1725
        %v1727 = vpop.f32.mrb[0].mxu0
        %v1728 = vpop.f32.mrb[0].mxu0
        %v1729 = vadd.f32 0.0, %v1728
        %v1730 = vpop.f32.mrb[0].mxu0
        %1731 = vmatprep.mubr.bf16.mxu0 %v1632
        %1732 = vmatmul.mubr.bf16.gmra.mrb[0].mxu0 %v1507
        %v1733 = vpop.f32.mrb[0].mxu0
        %v1734 = vadd.f32 0.0, %v1733
        %v1735 = vpop.f32.mrb[0].mxu0
        %v1736 = vpop.f32.mrb[0].mxu0
        %v1737 = vadd.f32 0.0, %v1736
        %v1738 = vpop.f32.mrb[0].mxu0
        %1739 = vmatprep.mubr.bf16.mxu0 %v1635
        %1740 = vmatmul.mubr.bf16.gmra.mrb[0].mxu0 %v1509
        %v1741 = vpop.f32.mrb[0].mxu0
        %v1742 = vadd.f32 0.0, %v1741
        %v1743 = vpop.f32.mrb[0].mxu0
        %v1744 = vpop.f32.mrb[0].mxu0
        %v1745 = vadd.f32 0.0, %v1744
        %v1746 = vpop.f32.mrb[0].mxu0
        %1747 = vmatprep.mubr.bf16.mxu0 %v1638
        %1748 = vmatmul.mubr.bf16.gmra.mrb[0].mxu0 %v1511
        %v1749 = vpop.f32.mrb[0].mxu0
        %v1750 = vadd.f32 0.0, %v1749
        %v1751 = vpop.f32.mrb[0].mxu0
        %v1752 = vpop.f32.mrb[0].mxu0
        %v1753 = vadd.f32 0.0, %v1752
        %v1754 = vpop.f32.mrb[0].mxu0
        %1755 = vmatprep.mubr.bf16.mxu0 %v1641
        %1756 = vmatmul.mubr.bf16.gmra.mrb[0].mxu0 %v1513
        %v1757 = vpop.f32.mrb[0].mxu0
        %v1758 = vadd.f32 0.0, %v1757
        %v1759 = vpop.f32.mrb[0].mxu0
        %v1760 = vpop.f32.mrb[0].mxu0
        %v1761 = vadd.f32 0.0, %v1760
        %v1762 = vpop.f32.mrb[0].mxu0
        %1763 = vmatprep.mubr.bf16.mxu0 %v1644
        %1764 = vmatmul.mubr.bf16.gmra.mrb[0].mxu0 %v1515
        %v1765 = vpop.f32.mrb[0].mxu0
        %v1766 = vadd.f32 0.0, %v1765
        %v1767 = vpop.f32.mrb[0].mxu0
        %v1768 = vpop.f32.mrb[0].mxu0
        %v1769 = vadd.f32 0.0, %v1768
        %v1770 = vpop.f32.mrb[0].mxu0
        %1771 = vmatprep.mubr.bf16.mxu0 %v1647
        %1772 = vmatmul.mubr.bf16.gmra.mrb[0].mxu0 %v1517
        %v1773 = vpop.f32.mrb[0].mxu0
        %v1774 = vadd.f32 0.0, %v1773
        %v1775 = vpop.f32.mrb[0].mxu0
        %v1776 = vpop.f32.mrb[0].mxu0
        %v1777 = vadd.f32 0.0, %v1776
        %v1778 = vpop.f32.mrb[0].mxu0
        %1779 = vmatprep.mubr.bf16.mxu0 %v1650
        %1780 = vmatmul.mubr.bf16.gmra.mrb[0].mxu0 %v1519
        %v1781 = vpop.f32.mrb[0].mxu0
        %v1782 = vadd.f32 0.0, %v1781
        %v1783 = vpop.f32.mrb[0].mxu0
        %v1784 = vpop.f32.mrb[0].mxu0
        %v1785 = vadd.f32 0.0, %v1784
        %v1786 = vpop.f32.mrb[0].mxu0
        %1787 = vmatprep.mubr.bf16.mxu0 %v1653
        %1788 = vmatmul.mubr.bf16.gmra.mrb[0].mxu0 %v1521
        %v1789 = vpop.f32.mrb[0].mxu0
        %v1790 = vadd.f32 0.0, %v1789
        %v1791 = vpop.f32.mrb[0].mxu0
        %v1792 = vpop.f32.mrb[0].mxu0
        %v1793 = vadd.f32 0.0, %v1792
        %v1794 = vpop.f32.mrb[0].mxu0
        %1795 = vmatprep.mubr.bf16.mxu0 %v1656
        %1796 = vmatmul.mubr.bf16.gmra.mrb[0].mxu0 %v1523
        %v1797 = vpop.f32.mrb[0].mxu0
        %v1798 = vadd.f32 0.0, %v1797
        %v1799 = vpop.f32.mrb[0].mxu0
        %v1800 = vpop.f32.mrb[0].mxu0
        %v1801 = vadd.f32 0.0, %v1800
        %v1802 = vpop.f32.mrb[0].mxu0
        %1803 = vmatprep.mubr.bf16.mxu0 %v1659
        %1804 = vmatmul.mubr.bf16.gmra.mrb[0].mxu0 %v1525
        %v1805 = vpop.f32.mrb[0].mxu0
        %v1806 = vadd.f32 0.0, %v1805
        %v1807 = vpop.f32.mrb[0].mxu0
        %v1808 = vpop.f32.mrb[0].mxu0
        %v1809 = vadd.f32 0.0, %v1808
        %v1810 = vpop.f32.mrb[0].mxu0
        %1811 = vmatprep.mubr.bf16.mxu0 %v1662
        %1812 = vmatmul.mubr.bf16.gmra.mrb[0].mxu0 %v1527
        %v1813 = vpop.f32.mrb[0].mxu0
        %v1814 = vadd.f32 0.0, %v1813
        %v1815 = vpop.f32.mrb[0].mxu0
        %v1816 = vpop.f32.mrb[0].mxu0
        %v1817 = vadd.f32 0.0, %v1816
        %v1818 = vpop.f32.mrb[0].mxu0
        %1819 = vmatprep.mubr.bf16.mxu0 %v1665
        %1820 = vmatmul.mubr.bf16.gmra.mrb[0].mxu0 %v1529
        %v1821 = vpop.f32.mrb[0].mxu0
        %v1822 = vadd.f32 0.0, %v1821
        %v1823 = vpop.f32.mrb[0].mxu0
        %v1824 = vpop.f32.mrb[0].mxu0
        %v1825 = vadd.f32 0.0, %v1824
        %v1826 = vpop.f32.mrb[0].mxu0
        %1827 = vdwg.mxu0
        %v1828 = vld [vmem:[#allocation2] sm:$0xff]
        %v1829 = vld [vmem:[#allocation2 + $0x8] sm:$0xff]
        %v1830 = vld [vmem:[#allocation2 + $0x10] sm:$0xff]
        %v1831 = vld [vmem:[#allocation2 + $0x18] sm:$0xff]
        %v1832 = vld [vmem:[#allocation2 + $0x20] sm:$0xff]
        %v1833 = vld [vmem:[#allocation2 + $0x28] sm:$0xff]
        %v1834 = vld [vmem:[#allocation2 + $0x30] sm:$0xff]
        %v1835 = vld [vmem:[#allocation2 + $0x38] sm:$0xff]
        %v1836 = vld [vmem:[#allocation2 + $0x40] sm:$0xff]
        %v1837 = vld [vmem:[#allocation2 + $0x48] sm:$0xff]
        %v1838 = vld [vmem:[#allocation2 + $0x50] sm:$0xff]
        %v1839 = vld [vmem:[#allocation2 + $0x58] sm:$0xff]
        %v1840 = vld [vmem:[#allocation2 + $0x60] sm:$0xff]
        %v1841 = vld [vmem:[#allocation2 + $0x68] sm:$0xff]
        %v1842 = vld [vmem:[#allocation2 + $0x70] sm:$0xff]
        %v1843 = vld [vmem:[#allocation2 + $0x78] sm:$0xff]
        %v1844 = vld [vmem:[#allocation2 + $0x80] sm:$0xff]
        %v1845 = vld [vmem:[#allocation2 + $0x88] sm:$0xff]
        %v1846 = vld [vmem:[#allocation2 + $0x90] sm:$0xff]
        %v1847 = vld [vmem:[#allocation2 + $0x98] sm:$0xff]
        %v1848 = vld [vmem:[#allocation2 + $0xa0] sm:$0xff]
        %v1849 = vld [vmem:[#allocation2 + $0xa8] sm:$0xff]
        %v1850 = vld [vmem:[#allocation2 + $0xb0] sm:$0xff]
        %v1851 = vld [vmem:[#allocation2 + $0xb8] sm:$0xff]
        %v1852 = vld [vmem:[#allocation2 + $0xc0] sm:$0xff]
        %v1853 = vld [vmem:[#allocation2 + $0xc8] sm:$0xff]
        %v1854 = vld [vmem:[#allocation2 + $0xd0] sm:$0xff]
        %v1855 = vld [vmem:[#allocation2 + $0xd8] sm:$0xff]
        %v1856 = vld [vmem:[#allocation2 + $0xe0] sm:$0xff]
        %v1857 = vld [vmem:[#allocation2 + $0xe8] sm:$0xff]
        %v1858 = vld [vmem:[#allocation2 + $0xf0] sm:$0xff]
        %v1859 = vld [vmem:[#allocation2 + $0xf8] sm:$0xff]
        %v1860 = vadd.f32 %v1828, %v1702
        %v1861 = vadd.f32 %v1829, %v1705
        %v1862 = vadd.f32 %v1830, %v1710
        %v1863 = vadd.f32 %v1831, %v1713
        %v1864 = vadd.f32 %v1832, %v1718
        %v1865 = vadd.f32 %v1833, %v1721
        %v1866 = vadd.f32 %v1834, %v1726
        %v1867 = vadd.f32 %v1835, %v1729
        %v1868 = vadd.f32 %v1836, %v1734
        %v1869 = vadd.f32 %v1837, %v1737
        %v1870 = vadd.f32 %v1838, %v1742
        %v1871 = vadd.f32 %v1839, %v1745
        %v1872 = vadd.f32 %v1840, %v1750
        %v1873 = vadd.f32 %v1841, %v1753
        %v1874 = vadd.f32 %v1842, %v1758
        %v1875 = vadd.f32 %v1843, %v1761
        %v1876 = vadd.f32 %v1844, %v1766
        %v1877 = vadd.f32 %v1845, %v1769
        %v1878 = vadd.f32 %v1846, %v1774
        %v1879 = vadd.f32 %v1847, %v1777
        %v1880 = vadd.f32 %v1848, %v1782
        %v1881 = vadd.f32 %v1849, %v1785
        %v1882 = vadd.f32 %v1850, %v1790
        %v1883 = vadd.f32 %v1851, %v1793
        %v1884 = vadd.f32 %v1852, %v1798
        %v1885 = vadd.f32 %v1853, %v1801
        %v1886 = vadd.f32 %v1854, %v1806
        %v1887 = vadd.f32 %v1855, %v1809
        %v1888 = vadd.f32 %v1856, %v1814
        %v1889 = vadd.f32 %v1857, %v1817
        %v1890 = vadd.f32 %v1858, %v1822
        %v1891 = vadd.f32 %v1859, %v1825
        %1892 = vst.msk [vmem:[#allocation2] sm:$0xff] %vm518, %v1860
        %1893 = vst.msk [vmem:[#allocation2 + $0x8] sm:$0xff] %vm518, %v1861
        %1894 = vst.msk [vmem:[#allocation2 + $0x10] sm:$0xff] %vm518, %v1862
        %1895 = vst.msk [vmem:[#allocation2 + $0x18] sm:$0xff] %vm518, %v1863
        %1896 = vst.msk [vmem:[#allocation2 + $0x20] sm:$0xff] %vm518, %v1864
        %1897 = vst.msk [vmem:[#allocation2 + $0x28] sm:$0xff] %vm518, %v1865
        %1898 = vst.msk [vmem:[#allocation2 + $0x30] sm:$0xff] %vm518, %v1866
        %1899 = vst.msk [vmem:[#allocation2 + $0x38] sm:$0xff] %vm518, %v1867
        %1900 = vst.msk [vmem:[#allocation2 + $0x40] sm:$0xff] %vm518, %v1868
        %1901 = vst.msk [vmem:[#allocation2 + $0x48] sm:$0xff] %vm518, %v1869
        %1902 = vst.msk [vmem:[#allocation2 + $0x50] sm:$0xff] %vm518, %v1870
        %1903 = vst.msk [vmem:[#allocation2 + $0x58] sm:$0xff] %vm518, %v1871
        %1904 = vst.msk [vmem:[#allocation2 + $0x60] sm:$0xff] %vm518, %v1872
        %1905 = vst.msk [vmem:[#allocation2 + $0x68] sm:$0xff] %vm518, %v1873
        %1906 = vst.msk [vmem:[#allocation2 + $0x70] sm:$0xff] %vm518, %v1874
        %1907 = vst.msk [vmem:[#allocation2 + $0x78] sm:$0xff] %vm518, %v1875
        %1908 = vst.msk [vmem:[#allocation2 + $0x80] sm:$0xff] %vm518, %v1876
        %1909 = vst.msk [vmem:[#allocation2 + $0x88] sm:$0xff] %vm518, %v1877
        %1910 = vst.msk [vmem:[#allocation2 + $0x90] sm:$0xff] %vm518, %v1878
        %1911 = vst.msk [vmem:[#allocation2 + $0x98] sm:$0xff] %vm518, %v1879
        %1912 = vst.msk [vmem:[#allocation2 + $0xa0] sm:$0xff] %vm518, %v1880
        %1913 = vst.msk [vmem:[#allocation2 + $0xa8] sm:$0xff] %vm518, %v1881
        %1914 = vst.msk [vmem:[#allocation2 + $0xb0] sm:$0xff] %vm518, %v1882
        %1915 = vst.msk [vmem:[#allocation2 + $0xb8] sm:$0xff] %vm518, %v1883
        %1916 = vst.msk [vmem:[#allocation2 + $0xc0] sm:$0xff] %vm518, %v1884
        %1917 = vst.msk [vmem:[#allocation2 + $0xc8] sm:$0xff] %vm518, %v1885
        %1918 = vst.msk [vmem:[#allocation2 + $0xd0] sm:$0xff] %vm518, %v1886
        %1919 = vst.msk [vmem:[#allocation2 + $0xd8] sm:$0xff] %vm518, %v1887
        %1920 = vst.msk [vmem:[#allocation2 + $0xe0] sm:$0xff] %vm518, %v1888
        %1921 = vst.msk [vmem:[#allocation2 + $0xe8] sm:$0xff] %vm518, %v1889
        %1922 = vst.msk [vmem:[#allocation2 + $0xf0] sm:$0xff] %vm518, %v1890
        %1923 = vst.msk [vmem:[#allocation2 + $0xf8] sm:$0xff] %vm518, %v1891
        %v1924 = vld [vmem:[#allocation2] sm:$0xff]
        %v1925 = vld [vmem:[#allocation2 + $0x8] sm:$0xff]
        %v1926 = vld [vmem:[#allocation2 + $0x10] sm:$0xff]
        %v1927 = vld [vmem:[#allocation2 + $0x18] sm:$0xff]
        %v1928 = vld [vmem:[#allocation2 + $0x20] sm:$0xff]
        %v1929 = vld [vmem:[#allocation2 + $0x28] sm:$0xff]
        %v1930 = vld [vmem:[#allocation2 + $0x30] sm:$0xff]
        %v1931 = vld [vmem:[#allocation2 + $0x38] sm:$0xff]
        %v1932 = vld [vmem:[#allocation2 + $0x40] sm:$0xff]
        %v1933 = vld [vmem:[#allocation2 + $0x48] sm:$0xff]
        %v1934 = vld [vmem:[#allocation2 + $0x50] sm:$0xff]
        %v1935 = vld [vmem:[#allocation2 + $0x58] sm:$0xff]
        %v1936 = vld [vmem:[#allocation2 + $0x60] sm:$0xff]
        %v1937 = vld [vmem:[#allocation2 + $0x68] sm:$0xff]
        %v1938 = vld [vmem:[#allocation2 + $0x70] sm:$0xff]
        %v1939 = vld [vmem:[#allocation2 + $0x78] sm:$0xff]
        %v1940 = vld [vmem:[#allocation2 + $0x80] sm:$0xff]
        %v1941 = vld [vmem:[#allocation2 + $0x88] sm:$0xff]
        %v1942 = vld [vmem:[#allocation2 + $0x90] sm:$0xff]
        %v1943 = vld [vmem:[#allocation2 + $0x98] sm:$0xff]
        %v1944 = vld [vmem:[#allocation2 + $0xa0] sm:$0xff]
        %v1945 = vld [vmem:[#allocation2 + $0xa8] sm:$0xff]
        %v1946 = vld [vmem:[#allocation2 + $0xb0] sm:$0xff]
        %v1947 = vld [vmem:[#allocation2 + $0xb8] sm:$0xff]
        %v1948 = vld [vmem:[#allocation2 + $0xc0] sm:$0xff]
        %v1949 = vld [vmem:[#allocation2 + $0xc8] sm:$0xff]
        %v1950 = vld [vmem:[#allocation2 + $0xd0] sm:$0xff]
        %v1951 = vld [vmem:[#allocation2 + $0xd8] sm:$0xff]
        %v1952 = vld [vmem:[#allocation2 + $0xe0] sm:$0xff]
        %v1953 = vld [vmem:[#allocation2 + $0xe8] sm:$0xff]
        %v1954 = vld [vmem:[#allocation2 + $0xf0] sm:$0xff]
        %v1955 = vld [vmem:[#allocation2 + $0xf8] sm:$0xff]
        %v1956 = vld [vmem:[%s2] sm:$0x1]
        %v1958 = vlaneseq
        %v1959 = vshrl.u32 %v1958, 7
        %v1960 = vsub.s32 0, %v1959
        %v1961 = vrot.slane %v1956, %v1960
        %v1963 = vmul.f32 %v1924, %v1961
        %v1964 = vmul.f32 %v1925, %v1961
        %v1965 = vmul.f32 %v1926, %v1961
        %v1966 = vmul.f32 %v1927, %v1961
        %v1967 = vmul.f32 %v1928, %v1961
        %v1968 = vmul.f32 %v1929, %v1961
        %v1969 = vmul.f32 %v1930, %v1961
        %v1970 = vmul.f32 %v1931, %v1961
        %v1971 = vmul.f32 %v1932, %v1961
        %v1972 = vmul.f32 %v1933, %v1961
        %v1973 = vmul.f32 %v1934, %v1961
        %v1974 = vmul.f32 %v1935, %v1961
        %v1975 = vmul.f32 %v1936, %v1961
        %v1976 = vmul.f32 %v1937, %v1961
        %v1977 = vmul.f32 %v1938, %v1961
        %v1978 = vmul.f32 %v1939, %v1961
        %v1979 = vmul.f32 %v1940, %v1961
        %v1980 = vmul.f32 %v1941, %v1961
        %v1981 = vmul.f32 %v1942, %v1961
        %v1982 = vmul.f32 %v1943, %v1961
        %v1983 = vmul.f32 %v1944, %v1961
        %v1984 = vmul.f32 %v1945, %v1961
        %v1985 = vmul.f32 %v1946, %v1961
        %v1986 = vmul.f32 %v1947, %v1961
        %v1987 = vmul.f32 %v1948, %v1961
        %v1988 = vmul.f32 %v1949, %v1961
        %v1989 = vmul.f32 %v1950, %v1961
        %v1990 = vmul.f32 %v1951, %v1961
        %v1991 = vmul.f32 %v1952, %v1961
        %v1992 = vmul.f32 %v1953, %v1961
        %v1993 = vmul.f32 %v1954, %v1961
        %v1994 = vmul.f32 %v1955, %v1961
        %v1995 = vld [vmem:[%s3] sm:$0x1]
        %v1997 = vlaneseq
        %v1998 = vshrl.u32 %v1997, 7
        %v1999 = vsub.s32 0, %v1998
        %v2000 = vrot.slane %v1995, %v1999
        %v2002 = vadd.f32 %v1963, %v2000
        %v2003 = vadd.f32 %v1964, %v2000
        %v2004 = vadd.f32 %v1965, %v2000
        %v2005 = vadd.f32 %v1966, %v2000
        %v2006 = vadd.f32 %v1967, %v2000
        %v2007 = vadd.f32 %v1968, %v2000
        %v2008 = vadd.f32 %v1969, %v2000
        %v2009 = vadd.f32 %v1970, %v2000
        %v2010 = vadd.f32 %v1971, %v2000
        %v2011 = vadd.f32 %v1972, %v2000
        %v2012 = vadd.f32 %v1973, %v2000
        %v2013 = vadd.f32 %v1974, %v2000
        %v2014 = vadd.f32 %v1975, %v2000
        %v2015 = vadd.f32 %v1976, %v2000
        %v2016 = vadd.f32 %v1977, %v2000
        %v2017 = vadd.f32 %v1978, %v2000
        %v2018 = vadd.f32 %v1979, %v2000
        %v2019 = vadd.f32 %v1980, %v2000
        %v2020 = vadd.f32 %v1981, %v2000
        %v2021 = vadd.f32 %v1982, %v2000
        %v2022 = vadd.f32 %v1983, %v2000
        %v2023 = vadd.f32 %v1984, %v2000
        %v2024 = vadd.f32 %v1985, %v2000
        %v2025 = vadd.f32 %v1986, %v2000
        %v2026 = vadd.f32 %v1987, %v2000
        %v2027 = vadd.f32 %v1988, %v2000
        %v2028 = vadd.f32 %v1989, %v2000
        %v2029 = vadd.f32 %v1990, %v2000
        %v2030 = vadd.f32 %v1991, %v2000
        %v2031 = vadd.f32 %v1992, %v2000
        %v2032 = vadd.f32 %v1993, %v2000
        %v2033 = vadd.f32 %v1994, %v2000
        %v2034 = vmax.f32 %v2002, 0.0
        %v2035 = vmax.f32 %v2003, 0.0
        %v2036 = vmax.f32 %v2004, 0.0
        %v2037 = vmax.f32 %v2005, 0.0
        %v2038 = vmax.f32 %v2006, 0.0
        %v2039 = vmax.f32 %v2007, 0.0
        %v2040 = vmax.f32 %v2008, 0.0
        %v2041 = vmax.f32 %v2009, 0.0
        %v2042 = vmax.f32 %v2010, 0.0
        %v2043 = vmax.f32 %v2011, 0.0
        %v2044 = vmax.f32 %v2012, 0.0
        %v2045 = vmax.f32 %v2013, 0.0
        %v2046 = vmax.f32 %v2014, 0.0
        %v2047 = vmax.f32 %v2015, 0.0
        %v2048 = vmax.f32 %v2016, 0.0
        %v2049 = vmax.f32 %v2017, 0.0
        %v2050 = vmax.f32 %v2018, 0.0
        %v2051 = vmax.f32 %v2019, 0.0
        %v2052 = vmax.f32 %v2020, 0.0
        %v2053 = vmax.f32 %v2021, 0.0
        %v2054 = vmax.f32 %v2022, 0.0
        %v2055 = vmax.f32 %v2023, 0.0
        %v2056 = vmax.f32 %v2024, 0.0
        %v2057 = vmax.f32 %v2025, 0.0
        %v2058 = vmax.f32 %v2026, 0.0
        %v2059 = vmax.f32 %v2027, 0.0
        %v2060 = vmax.f32 %v2028, 0.0
        %v2061 = vmax.f32 %v2029, 0.0
        %v2062 = vmax.f32 %v2030, 0.0
        %v2063 = vmax.f32 %v2031, 0.0
        %v2064 = vmax.f32 %v2032, 0.0
        %v2065 = vmax.f32 %v2033, 0.0
        %v2066 = vpack.c.bf16 %v2035, %v2034
        %v2067 = vpack.c.bf16 %v2037, %v2036
        %v2068 = vpack.c.bf16 %v2039, %v2038
        %v2069 = vpack.c.bf16 %v2041, %v2040
        %v2070 = vpack.c.bf16 %v2043, %v2042
        %v2071 = vpack.c.bf16 %v2045, %v2044
        %v2072 = vpack.c.bf16 %v2047, %v2046
        %v2073 = vpack.c.bf16 %v2049, %v2048
        %v2074 = vpack.c.bf16 %v2051, %v2050
        %v2075 = vpack.c.bf16 %v2053, %v2052
        %v2076 = vpack.c.bf16 %v2055, %v2054
        %v2077 = vpack.c.bf16 %v2057, %v2056
        %v2078 = vpack.c.bf16 %v2059, %v2058
        %v2079 = vpack.c.bf16 %v2061, %v2060
        %v2080 = vpack.c.bf16 %v2063, %v2062
        %v2081 = vpack.c.bf16 %v2065, %v2064
        %v2098 = vunpack.c.l.b16 %v2066
        %v2099 = vunpack.c.h.b16 %v2066
        %v2100 = vunpack.c.l.b16 %v2067
        %v2101 = vunpack.c.h.b16 %v2067
        %v2102 = vunpack.c.l.b16 %v2068
        %v2103 = vunpack.c.h.b16 %v2068
        %v2104 = vunpack.c.l.b16 %v2069
        %v2105 = vunpack.c.h.b16 %v2069
        %v2106 = vunpack.c.l.b16 %v2070
        %v2107 = vunpack.c.h.b16 %v2070
        %v2108 = vunpack.c.l.b16 %v2071
        %v2109 = vunpack.c.h.b16 %v2071
        %v2110 = vunpack.c.l.b16 %v2072
        %v2111 = vunpack.c.h.b16 %v2072
        %v2112 = vunpack.c.l.b16 %v2073
        %v2113 = vunpack.c.h.b16 %v2073
        %v2114 = vunpack.c.l.b16 %v2074
        %v2115 = vunpack.c.h.b16 %v2074
        %v2116 = vunpack.c.l.b16 %v2075
        %v2117 = vunpack.c.h.b16 %v2075
        %v2118 = vunpack.c.l.b16 %v2076
        %v2119 = vunpack.c.h.b16 %v2076
        %v2120 = vunpack.c.l.b16 %v2077
        %v2121 = vunpack.c.h.b16 %v2077
        %v2122 = vunpack.c.l.b16 %v2078
        %v2123 = vunpack.c.h.b16 %v2078
        %v2124 = vunpack.c.l.b16 %v2079
        %v2125 = vunpack.c.h.b16 %v2079
        %v2126 = vunpack.c.l.b16 %v2080
        %v2127 = vunpack.c.h.b16 %v2080
        %v2128 = vunpack.c.l.b16 %v2081
        %v2129 = vunpack.c.h.b16 %v2081
        %v2130 = vpack.c.b16 %v2098, %v2098
        %v2131 = vpack.c.b16 %v2099, %v2099
        %v2132 = vpack.c.b16 %v2100, %v2100
        %v2133 = vpack.c.b16 %v2101, %v2101
        %v2134 = vpack.c.b16 %v2102, %v2102
        %v2135 = vpack.c.b16 %v2103, %v2103
        %v2136 = vpack.c.b16 %v2104, %v2104
        %v2137 = vpack.c.b16 %v2105, %v2105
        %v2138 = vpack.c.b16 %v2106, %v2106
        %v2139 = vpack.c.b16 %v2107, %v2107
        %v2140 = vpack.c.b16 %v2108, %v2108
        %v2141 = vpack.c.b16 %v2109, %v2109
        %v2142 = vpack.c.b16 %v2110, %v2110
        %v2143 = vpack.c.b16 %v2111, %v2111
        %v2144 = vpack.c.b16 %v2112, %v2112
        %v2145 = vpack.c.b16 %v2113, %v2113
        %v2146 = vpack.c.b16 %v2114, %v2114
        %v2147 = vpack.c.b16 %v2115, %v2115
        %v2148 = vpack.c.b16 %v2116, %v2116
        %v2149 = vpack.c.b16 %v2117, %v2117
        %v2150 = vpack.c.b16 %v2118, %v2118
        %v2151 = vpack.c.b16 %v2119, %v2119
        %v2152 = vpack.c.b16 %v2120, %v2120
        %v2153 = vpack.c.b16 %v2121, %v2121
        %v2154 = vpack.c.b16 %v2122, %v2122
        %v2155 = vpack.c.b16 %v2123, %v2123
        %v2156 = vpack.c.b16 %v2124, %v2124
        %v2157 = vpack.c.b16 %v2125, %v2125
        %v2158 = vpack.c.b16 %v2126, %v2126
        %v2159 = vpack.c.b16 %v2127, %v2127
        %v2160 = vpack.c.b16 %v2128, %v2128
        %v2161 = vpack.c.b16 %v2129, %v2129
        %vm2194 = vcmask 519168
        %2195 = vst.msk [vmem:[%s239] sm:$0xf] %vm2194, %v2130
        %2196 = vst.msk [vmem:[%s239 + $0x4] sm:$0xf] %vm2194, %v2131
        %2197 = vst.msk [vmem:[%s239 + $0x8] sm:$0xf] %vm2194, %v2132
        %2198 = vst.msk [vmem:[%s239 + $0xc] sm:$0xf] %vm2194, %v2133
        %2199 = vst.msk [vmem:[%s239 + $0x10] sm:$0xf] %vm2194, %v2134
        %2200 = vst.msk [vmem:[%s239 + $0x14] sm:$0xf] %vm2194, %v2135
        %2201 = vst.msk [vmem:[%s239 + $0x18] sm:$0xf] %vm2194, %v2136
        %2202 = vst.msk [vmem:[%s239 + $0x1c] sm:$0xf] %vm2194, %v2137
        %2203 = vst.msk [vmem:[%s239 + $0x20] sm:$0xf] %vm2194, %v2138
        %2204 = vst.msk [vmem:[%s239 + $0x24] sm:$0xf] %vm2194, %v2139
        %2205 = vst.msk [vmem:[%s239 + $0x28] sm:$0xf] %vm2194, %v2140
        %2206 = vst.msk [vmem:[%s239 + $0x2c] sm:$0xf] %vm2194, %v2141
        %2207 = vst.msk [vmem:[%s239 + $0x30] sm:$0xf] %vm2194, %v2142
        %2208 = vst.msk [vmem:[%s239 + $0x34] sm:$0xf] %vm2194, %v2143
        %2209 = vst.msk [vmem:[%s239 + $0x38] sm:$0xf] %vm2194, %v2144
        %2210 = vst.msk [vmem:[%s239 + $0x3c] sm:$0xf] %vm2194, %v2145
        %2211 = vst.msk [vmem:[%s239 + $0x40] sm:$0xf] %vm2194, %v2146
        %2212 = vst.msk [vmem:[%s239 + $0x44] sm:$0xf] %vm2194, %v2147
        %2213 = vst.msk [vmem:[%s239 + $0x48] sm:$0xf] %vm2194, %v2148
        %2214 = vst.msk [vmem:[%s239 + $0x4c] sm:$0xf] %vm2194, %v2149
        %2215 = vst.msk [vmem:[%s239 + $0x50] sm:$0xf] %vm2194, %v2150
        %2216 = vst.msk [vmem:[%s239 + $0x54] sm:$0xf] %vm2194, %v2151
        %2217 = vst.msk [vmem:[%s239 + $0x58] sm:$0xf] %vm2194, %v2152
        %2218 = vst.msk [vmem:[%s239 + $0x5c] sm:$0xf] %vm2194, %v2153
        %2219 = vst.msk [vmem:[%s239 + $0x60] sm:$0xf] %vm2194, %v2154
        %2220 = vst.msk [vmem:[%s239 + $0x64] sm:$0xf] %vm2194, %v2155
        %2221 = vst.msk [vmem:[%s239 + $0x68] sm:$0xf] %vm2194, %v2156
        %2222 = vst.msk [vmem:[%s239 + $0x6c] sm:$0xf] %vm2194, %v2157
        %2223 = vst.msk [vmem:[%s239 + $0x70] sm:$0xf] %vm2194, %v2158
        %2224 = vst.msk [vmem:[%s239 + $0x74] sm:$0xf] %vm2194, %v2159
        %2225 = vst.msk [vmem:[%s239 + $0x78] sm:$0xf] %vm2194, %v2160
        %2226 = vst.msk [vmem:[%s239 + $0x7c] sm:$0xf] %vm2194, %v2161
        %s2227 = smul.u32 32, %s23
        %p2228 = scmp.lt.s32.totalorder %s22, 1
        %s2229 = scalar_select %p2228, %s22, 1
        %p2230 = scmp.lt.s32.totalorder %s2227, 31
        %s2231 = scalar_select %p2230, %s2227, 31
        %s2232 = smul.addr %s2229, 32
        %s2233 = sadd.s32 %s2231, %s2232
        %s2234 = smul.addr %s2233, 4
        %s2235 = scalar_lea.vmem %s4, %s2234
        // Predicated region
        $region41: #{tpu_custom_call.1} parent=35 // pred_check
          %p2236 = pneg %p139
        $region42: #{tpu_custom_call.1} parent=35 // pred_check_branch
          %2238 = sbr.rel (%p2236) target = $region44
        $region43: #{tpu_custom_call.1} parent=35 // pred_region
          %s2239 = smul.u32 32, %s23
        $region44: #{tpu_custom_call.1} parent=35 // pred_fallthru
          _
      $region36: #{tpu_custom_call.1} parent=5 // pred_fallthru
        _
      %p2240 = scmp.le.s32.totalorder 2, %s13
      // Predicated region
      $region45: #{tpu_custom_call.1} parent=5 // pred_check
        %p2241 = pneg %p2240
      $region46: #{tpu_custom_call.1} parent=5 // pred_check_branch
        %2243 = sbr.rel (%p2241) target = $region48
      $region47: #{tpu_custom_call.1} parent=5 // pred_region
        %s2244 = ssub.s32 %s13, 2
        // Predicated region
        $region49: #{tpu_custom_call.1} parent=47 // pred_check
          %p2245 = pneg %p145
        $region50: #{tpu_custom_call.1} parent=47 // pred_check_branch
          %2247 = sbr.rel (%p2245) target = $region52
        $region51: #{tpu_custom_call.1} parent=47 // pred_region
          %s2248 = smul.u32 32, %s25
          %p2249 = scmp.lt.s32.totalorder %s24, 1
          %s2250 = scalar_select %p2249, %s24, 1
          %p2251 = scmp.lt.s32.totalorder %s2248, 31
          %s2252 = scalar_select %p2251, %s2248, 31
          %s2253 = smul.addr %s2250, 32
          %s2254 = sadd.s32 %s2252, %s2253
          %s2255 = smul.addr %s2254, 4
          %s2256 = scalar_lea.vmem %s4, %s2255
        $region52: #{tpu_custom_call.1} parent=47 // pred_fallthru
          _
      $region48: #{tpu_custom_call.1} parent=5 // pred_fallthru
        _
    $region6: #{tpu_custom_call.1} parent=1 // loop_footer
      %s17 = sadd.s32 1, %s13
    $region7: #{tpu_custom_call.1} parent=1 // loop_footer_branch
      %12 = sbr.rel target = $region3
    $region8: #{tpu_custom_call.1} parent=1 // loop_exit
      _
    %2257 = vsyncpa [#allocation4], 1
    %s2258 = scalar_lea.sflag [#allocation4], 1
    %2259 = vsyncpa %s2258, 1

</llo_original>
